<compile_context>
chip_gen: v5e
topology: v5e:2x2
jax: 0.10.0
libtpu: 0.0.40
codegen_flags: <defaults>
</compile_context>

<pallas_src>
import functools

import jax
import jax.numpy as jnp
from jax.experimental import pallas as pl
from jax.experimental.pallas import tpu as pltpu

_BN_EPS = 1e-5
_LEAKY_SLOPE = 0.01  # nn.LeakyReLU() default


# ---------------------------------------------------------------------------
# helpers
# ---------------------------------------------------------------------------
def _round_up(a, m):
    return (a + m - 1) // m * m


def _choose_row_tile(m, bytes_per_row):
    """Pick (tile_rows, padded_rows) keeping the activation slab VMEM-friendly."""
    m_pad = _round_up(m, 8)
    # Whole problem in one grid step if it comfortably fits VMEM.
    if m_pad <= 2048 and m_pad * bytes_per_row <= (4 << 20):
        return m_pad, m_pad
    # Otherwise largest 8-aligned tile <= 1024 rows whose double-buffered
    # activation slab stays under ~8 MiB (safe on v7x's 64 MiB VMEM too).
    tm = (8 << 20) // (2 * max(bytes_per_row, 1))
    tm = max(8, min(1024, tm // 8 * 8))
    return tm, _round_up(m, tm)


def _shifted_views(x_nhwc, k, stride, pad):
    """All k*k strided window shifts, each flattened to (N*Ho*Wo, C)."""
    n, h, w, c = x_nhwc.shape
    if pad:
        x_nhwc = jnp.pad(x_nhwc, ((0, 0), (pad, pad), (pad, pad), (0, 0)))
    hp, wp = h + 2 * pad, w + 2 * pad
    ho = (hp - k) // stride + 1
    wo = (wp - k) // stride + 1
    views = []
    for dy in range(k):
        for dx in range(k):
            sl = jax.lax.slice(
                x_nhwc,
                (0, dy, dx, 0),
                (n, dy + stride * (ho - 1) + 1, dx + stride * (wo - 1) + 1, c),
                (1, stride, stride, 1))
            views.append(sl.reshape(n * ho * wo, c))
    return views, (n, ho, wo)


# ---------------------------------------------------------------------------
# conv + BN + LeakyReLU   (single fused Pallas kernel per layer)
# ---------------------------------------------------------------------------
def _conv_mm_kernel(x_ref, w_ref, scale_ref, bias_ref, o_ref, *, negative_slope):
    # (tm, K) @ (K, Cout) on the MXU with f32 accumulation, then fused
    # inference-BN (per-channel scale/bias) and LeakyReLU.
    acc = jnp.dot(x_ref[...], w_ref[...], preferred_element_type=jnp.float32)
    y = acc * scale_ref[...] + bias_ref[...]
    o_ref[...] = jnp.where(y >= 0, y, negative_slope * y).astype(o_ref.dtype)


def conv_bn_lrelu_pallas(x_nhwc, p, *, k, stride, pad):
    views, (n, ho, wo) = _shifted_views(x_nhwc, k, stride, pad)
    patches = jnp.concatenate(views, axis=-1)           # (M, k*k*Cin)
    m, kdim = patches.shape
    cout = p["w"].shape[0]

    # PyTorch OIHW -> (kh, kw, Cin, Cout) -> (K, Cout); matches patch column order.
    w_mat = jnp.transpose(p["w"], (2, 3, 1, 0)).reshape(kdim, cout)
    scale = (p["gamma"] / jnp.sqrt(p["var"] + _BN_EPS)).reshape(1, cout)
    bias = ((p["b"] - p["mean"]) * scale[0] + p["beta"]).reshape(1, cout)

    tm, m_pad = _choose_row_tile(m, (kdim + cout) * 4)
    if m_pad != m:
        patches = jnp.pad(patches, ((0, m_pad - m), (0, 0)))

    out = pl.pallas_call(
        functools.partial(_conv_mm_kernel, negative_slope=_LEAKY_SLOPE),
        out_shape=jax.ShapeDtypeStruct((m_pad, cout), x_nhwc.dtype),
        grid_spec=pltpu.PrefetchScalarGridSpec(
            num_scalar_prefetch=0,
            grid=(m_pad // tm,),                               # rows only; no K axis
            in_specs=[
                pl.BlockSpec((tm, kdim), lambda i: (i, 0)),    # activations tile
                pl.BlockSpec((kdim, cout), lambda i: (0, 0)),  # whole weight resident
                pl.BlockSpec((1, cout), lambda i: (0, 0)),     # fused BN scale
                pl.BlockSpec((1, cout), lambda i: (0, 0)),     # fused BN/conv bias
            ],
            out_specs=pl.BlockSpec((tm, cout), lambda i: (i, 0)),
        ),
        compiler_params=pltpu.CompilerParams(
            dimension_semantics=("parallel",)),
    )(patches, w_mat, scale, bias)

    return out[:m].reshape(n, ho, wo, cout)


# ---------------------------------------------------------------------------
# MaxPool2d  (Pallas kernel: elementwise max over window shifts)
# ---------------------------------------------------------------------------
def _maxpool_kernel(x_ref, o_ref):
    t = x_ref.shape[0]
    acc = x_ref[0]
    for i in range(1, t):          # static unrolled loop over window positions
        acc = jnp.maximum(acc, x_ref[i])
    o_ref[...] = acc


def maxpool_pallas(x_nhwc, *, k, stride):
    views, (n, ho, wo) = _shifted_views(x_nhwc, k, stride, 0)
    stacked = jnp.stack(views, axis=0)                   # (k*k, M, C)
    t, m, c = stacked.shape

    tm, m_pad = _choose_row_tile(m, (t + 1) * c * 4)
    if m_pad != m:
        stacked = jnp.pad(stacked, ((0, 0), (0, m_pad - m), (0, 0)))

    out = pl.pallas_call(
        _maxpool_kernel,
        out_shape=jax.ShapeDtypeStruct((m_pad, c), x_nhwc.dtype),
        grid_spec=pltpu.PrefetchScalarGridSpec(
            num_scalar_prefetch=0,
            grid=(m_pad // tm,),
            in_specs=[pl.BlockSpec((t, tm, c), lambda i: (0, i, 0))],
            out_specs=pl.BlockSpec((tm, c), lambda i: (i, 0)),
        ),
        compiler_params=pltpu.CompilerParams(
            dimension_semantics=("parallel",)),
    )(stacked)

    return out[:m].reshape(n, ho, wo, c)


# ---------------------------------------------------------------------------
# architecture parsing (mirrors ConvNetwork.create) + params
# ---------------------------------------------------------------------------
def build_layer_specs(architecture, in_channels):
    specs = []
    inp = in_channels
    for layer in architecture:
        if isinstance(layer, list):
            for sub in layer:
                if isinstance(sub, list):                # [(spec1), (spec2), repeats]
                    for _ in range(sub[2]):
                        for ksz, out, s, p in (sub[0], sub[1]):
                            specs.append(("conv", dict(k=ksz, cin=inp, cout=out,
                                                       stride=s, pad=p)))
                            inp = out
                else:                                     # (kernel, out, stride, pad)
                    ksz, out, s, p = sub
                    specs.append(("conv", dict(k=ksz, cin=inp, cout=out,
                                               stride=s, pad=p)))
                    inp = out
        else:                                             # maxpool: (kernel, stride)
            specs.append(("pool", dict(k=layer[0], stride=layer[1])))
    return specs, inp


def init_params(key, specs, dtype=jnp.float32):
    params = []
    for kind, cfg in specs:
        if kind != "conv":
            continue
        key, k1, k2, k3, k4, k5, k6 = jax.random.split(key, 7)
        fan_in = cfg["cin"] * cfg["k"] * cfg["k"]
        s = float(fan_in) ** -0.5
        cout = cfg["cout"]
        params.append({
            "w": jax.random.uniform(k1, (cout, cfg["cin"], cfg["k"], cfg["k"]),
                                    dtype, -s, s),
            "b": jax.random.uniform(k2, (cout,), dtype, -s, s),
            "gamma": jax.random.uniform(k3, (cout,), dtype, 0.5, 1.5),
            "beta": jax.random.uniform(k4, (cout,), dtype, -0.5, 0.5),
            "mean": jax.random.uniform(k5, (cout,), dtype, -0.5, 0.5),
            "var": jax.random.uniform(k6, (cout,), dtype, 0.5, 1.5),
        })
    return params


def convnetwork_forward(x_nchw, params, specs):
    x = jnp.transpose(x_nchw, (0, 2, 3, 1))               # NCHW -> NHWC (lanes = C)
    pi = 0
    for kind, cfg in specs:
        if kind == "conv":
            x = conv_bn_lrelu_pallas(x, params[pi],
                                     k=cfg["k"], stride=cfg["stride"], pad=cfg["pad"])
            pi += 1
        else:
            x = maxpool_pallas(x, k=cfg["k"], stride=cfg["stride"])
    return jnp.transpose(x, (0, 3, 1, 2))                 # back to NCHW


# ---------------------------------------------------------------------------
# pure-JAX reference (for correctness check only)
# ---------------------------------------------------------------------------
def reference_forward(x_nchw, params, specs):
    x = x_nchw
    pi = 0
    for kind, cfg in specs:
        if kind == "conv":
            p = params[pi]
            pi += 1
            y = jax.lax.conv_general_dilated(
                x, p["w"], (cfg["stride"], cfg["stride"]),
                [(cfg["pad"], cfg["pad"]), (cfg["pad"], cfg["pad"])],
                dimension_numbers=("NCHW", "OIHW", "NCHW"),
                precision=jax.lax.Precision.HIGHEST)
            y = y + p["b"][None, :, None, None]
            y = ((y - p["mean"][None, :, None, None])
                 / jnp.sqrt(p["var"] + _BN_EPS)[None, :, None, None]
                 * p["gamma"][None, :, None, None]
                 + p["beta"][None, :, None, None])
            x = jnp.where(y >= 0, y, _LEAKY_SLOPE * y)
        else:
            k, s = cfg["k"], cfg["stride"]
            x = jax.lax.reduce_window(x, -jnp.inf, jax.lax.max,
                                      (1, 1, k, k), (1, 1, s, s), "VALID")
    return x


# ---------------------------------------------------------------------------
if __name__ == "__main__":
    # Small YOLO-style architecture exercising every branch of create():
    #   conv list, maxpool entry, repeated conv pair, strided conv.
    # Conv spec = (kernel_size, out_channels, stride, padding); pool = (k, s).
    architecture = [
        [(3, 16, 1, 1)],
        (2, 2),
        [[(1, 8, 1, 0), (3, 16, 1, 1), 2], (3, 32, 2, 1)],
        (2, 2),
    ]
    batch, in_channels, spatial = 2, 4, 16

    specs, _ = build_layer_specs(architecture, in_channels)

    key = jax.random.PRNGKey(0)
    kx, kp = jax.random.split(key)
    x = jax.random.normal(kx, (batch, in_channels, spatial, spatial), jnp.float32)
    params = init_params(kp, specs)

    forward = jax.jit(lambda xx, pp: convnetwork_forward(xx, pp, specs))
    out = jax.block_until_ready(forward(x, params))

    ref = reference_forward(x, params, specs)
    assert out.shape == ref.shape == (batch, 32, 2, 2), (out.shape, ref.shape)
    assert jnp.allclose(out, ref, atol=1e-3, rtol=1e-3), float(
        jnp.max(jnp.abs(out - ref)))

    print("KERNEL_OK")
</pallas_src>

<mosaic_0001>
module attributes {stable_mosaic.version = 11 : i64} {
  func.func @_conv_mm_kernel(%arg0: i32, %arg1: memref<512x36xf32, #tpu.memory_space<vmem>>, %arg2: memref<36x16xf32, #tpu.memory_space<vmem>>, %arg3: memref<1x16xf32, #tpu.memory_space<vmem>>, %arg4: memref<1x16xf32, #tpu.memory_space<vmem>>, %arg5: memref<512x16xf32, #tpu.memory_space<vmem>>) attributes {dimension_semantics = [#tpu.dimension_semantics<parallel>], iteration_bounds = array<i64: 1>, scalar_prefetch = 0 : i64, scratch_operands = 0 : i64, tpu.core_type = #tpu.core_type<tc>, window_params = [{transform_indices = @transform_0, window_bounds = array<i64: 512, 36>}, {pipeline_mode = #tpu.pipeline_mode<synchronous>, transform_indices = @transform_1, window_bounds = array<i64: 36, 16>}, {pipeline_mode = #tpu.pipeline_mode<synchronous>, transform_indices = @transform_2, window_bounds = array<i64: 1, 16>}, {pipeline_mode = #tpu.pipeline_mode<synchronous>, transform_indices = @transform_3, window_bounds = array<i64: 1, 16>}, {transform_indices = @transform_4, window_bounds = array<i64: 512, 16>}]} {
    %c0 = arith.constant 0 : index
    %c0_0 = arith.constant 0 : index
    %0 = vector.load %arg1[%c0, %c0_0] : memref<512x36xf32, #tpu.memory_space<vmem>>, vector<512x36xf32>
    %c0_1 = arith.constant 0 : index
    %c0_2 = arith.constant 0 : index
    %1 = vector.load %arg2[%c0_1, %c0_2] : memref<36x16xf32, #tpu.memory_space<vmem>>, vector<36x16xf32>
    %cst = arith.constant dense<0.000000e+00> : vector<512x16xf32>
    %2 = tpu.matmul %0, %1, %cst {dimension_numbers = #tpu.dot_dimension_numbers<[1], [0], [0], [1], [0, 0, 1, 1], [], []>} : vector<512x36xf32>, vector<36x16xf32>, vector<512x16xf32> -> vector<512x16xf32>
    %c0_3 = arith.constant 0 : index
    %c0_4 = arith.constant 0 : index
    %3 = vector.load %arg3[%c0_3, %c0_4] : memref<1x16xf32, #tpu.memory_space<vmem>>, vector<1x16xf32>
    %4 = vector.broadcast %3 : vector<1x16xf32> to vector<512x16xf32>
    %5 = arith.mulf %2, %4 : vector<512x16xf32>
    %c0_5 = arith.constant 0 : index
    %c0_6 = arith.constant 0 : index
    %6 = vector.load %arg4[%c0_5, %c0_6] : memref<1x16xf32, #tpu.memory_space<vmem>>, vector<1x16xf32>
    %7 = vector.broadcast %6 : vector<1x16xf32> to vector<512x16xf32>
    %8 = arith.addf %5, %7 : vector<512x16xf32>
    %cst_7 = arith.constant 0.000000e+00 : f32
    %9 = vector.broadcast %cst_7 : f32 to vector<512x16xf32>
    %10 = arith.cmpf oge, %8, %9 : vector<512x16xf32>
    %cst_8 = arith.constant 0.00999999977 : f32
    %11 = vector.broadcast %cst_8 : f32 to vector<512x16xf32>
    %12 = arith.mulf %11, %8 : vector<512x16xf32>
    %13 = arith.select %10, %8, %12 : vector<512x16xi1>, vector<512x16xf32>
    %c0_9 = arith.constant 0 : index
    %c0_10 = arith.constant 0 : index
    %14 = vector.load %arg5[%c0_9, %c0_10] : memref<512x16xf32, #tpu.memory_space<vmem>>, vector<512x16xf32>
    tpu.vector_store %arg5[%c0_9, %c0_10], %13 {strides = array<i32>} : memref<512x16xf32, #tpu.memory_space<vmem>>, vector<512x16xf32>,
    return
  }
  func.func @transform_0(%arg0: i32) -> (i32, i32) {
    %c0_i32 = arith.constant 0 : i32
    %c0_i32_0 = arith.constant 0 : i32
    return %arg0, %c0_i32 : i32, i32
  }
  func.func @transform_1(%arg0: i32) -> (i32, i32) {
    %c0_i32 = arith.constant 0 : i32
    %c0_i32_0 = arith.constant 0 : i32
    %c0_i32_1 = arith.constant 0 : i32
    return %c0_i32, %c0_i32_0 : i32, i32
  }
  func.func @transform_2(%arg0: i32) -> (i32, i32) {
    %c0_i32 = arith.constant 0 : i32
    %c0_i32_0 = arith.constant 0 : i32
    %c0_i32_1 = arith.constant 0 : i32
    return %c0_i32, %c0_i32_0 : i32, i32
  }
  func.func @transform_3(%arg0: i32) -> (i32, i32) {
    %c0_i32 = arith.constant 0 : i32
    %c0_i32_0 = arith.constant 0 : i32
    %c0_i32_1 = arith.constant 0 : i32
    return %c0_i32, %c0_i32_0 : i32, i32
  }
  func.func @transform_4(%arg0: i32) -> (i32, i32) {
    %c0_i32 = arith.constant 0 : i32
    %c0_i32_0 = arith.constant 0 : i32
    return %arg0, %c0_i32 : i32, i32
  }
}

module attributes {stable_mosaic.version = 11 : i64} {
  func.func @_maxpool_kernel(%arg0: i32, %arg1: memref<4x128x16xf32, #tpu.memory_space<vmem>>, %arg2: memref<128x16xf32, #tpu.memory_space<vmem>>) attributes {dimension_semantics = [#tpu.dimension_semantics<parallel>], iteration_bounds = array<i64: 1>, scalar_prefetch = 0 : i64, scratch_operands = 0 : i64, tpu.core_type = #tpu.core_type<tc>, window_params = [{transform_indices = @transform_0, window_bounds = array<i64: 4, 128, 16>}, {transform_indices = @transform_1, window_bounds = array<i64: 128, 16>}]} {
    %c0 = arith.constant 0 : index
    %c0_0 = arith.constant 0 : index
    %c0_1 = arith.constant 0 : index
    %0 = vector.load %arg1[%c0, %c0_0, %c0_1] : memref<4x128x16xf32, #tpu.memory_space<vmem>>, vector<1x128x16xf32>
    %1 = vector.shape_cast %0 : vector<1x128x16xf32> to vector<128x16xf32>
    %c1 = arith.constant 1 : index
    %c0_2 = arith.constant 0 : index
    %c0_3 = arith.constant 0 : index
    %2 = vector.load %arg1[%c1, %c0_2, %c0_3] : memref<4x128x16xf32, #tpu.memory_space<vmem>>, vector<1x128x16xf32>
    %3 = vector.shape_cast %2 : vector<1x128x16xf32> to vector<128x16xf32>
    %4 = arith.maximumf %1, %3 : vector<128x16xf32>
    %c2 = arith.constant 2 : index
    %c0_4 = arith.constant 0 : index
    %c0_5 = arith.constant 0 : index
    %5 = vector.load %arg1[%c2, %c0_4, %c0_5] : memref<4x128x16xf32, #tpu.memory_space<vmem>>, vector<1x128x16xf32>
    %6 = vector.shape_cast %5 : vector<1x128x16xf32> to vector<128x16xf32>
    %7 = arith.maximumf %4, %6 : vector<128x16xf32>
    %c3 = arith.constant 3 : index
    %c0_6 = arith.constant 0 : index
    %c0_7 = arith.constant 0 : index
    %8 = vector.load %arg1[%c3, %c0_6, %c0_7] : memref<4x128x16xf32, #tpu.memory_space<vmem>>, vector<1x128x16xf32>
    %9 = vector.shape_cast %8 : vector<1x128x16xf32> to vector<128x16xf32>
    %10 = arith.maximumf %7, %9 : vector<128x16xf32>
    %c0_8 = arith.constant 0 : index
    %c0_9 = arith.constant 0 : index
    %11 = vector.load %arg2[%c0_8, %c0_9] : memref<128x16xf32, #tpu.memory_space<vmem>>, vector<128x16xf32>
    tpu.vector_store %arg2[%c0_8, %c0_9], %10 {strides = array<i32>} : memref<128x16xf32, #tpu.memory_space<vmem>>, vector<128x16xf32>,
    return
  }
  func.func @transform_0(%arg0: i32) -> (i32, i32, i32) {
    %c0_i32 = arith.constant 0 : i32
    %c0_i32_0 = arith.constant 0 : i32
    %c0_i32_1 = arith.constant 0 : i32
    return %c0_i32, %arg0, %c0_i32_0 : i32, i32, i32
  }
  func.func @transform_1(%arg0: i32) -> (i32, i32) {
    %c0_i32 = arith.constant 0 : i32
    %c0_i32_0 = arith.constant 0 : i32
    return %arg0, %c0_i32 : i32, i32
  }
}

module attributes {stable_mosaic.version = 11 : i64} {
  func.func @_conv_mm_kernel(%arg0: i32, %arg1: memref<128x16xf32, #tpu.memory_space<vmem>>, %arg2: memref<16x8xf32, #tpu.memory_space<vmem>>, %arg3: memref<1x8xf32, #tpu.memory_space<vmem>>, %arg4: memref<1x8xf32, #tpu.memory_space<vmem>>, %arg5: memref<128x8xf32, #tpu.memory_space<vmem>>) attributes {dimension_semantics = [#tpu.dimension_semantics<parallel>], iteration_bounds = array<i64: 1>, scalar_prefetch = 0 : i64, scratch_operands = 0 : i64, tpu.core_type = #tpu.core_type<tc>, window_params = [{transform_indices = @transform_0, window_bounds = array<i64: 128, 16>}, {pipeline_mode = #tpu.pipeline_mode<synchronous>, transform_indices = @transform_1, window_bounds = array<i64: 16, 8>}, {pipeline_mode = #tpu.pipeline_mode<synchronous>, transform_indices = @transform_2, window_bounds = array<i64: 1, 8>}, {pipeline_mode = #tpu.pipeline_mode<synchronous>, transform_indices = @transform_3, window_bounds = array<i64: 1, 8>}, {transform_indices = @transform_4, window_bounds = array<i64: 128, 8>}]} {
    %c0 = arith.constant 0 : index
    %c0_0 = arith.constant 0 : index
    %0 = vector.load %arg1[%c0, %c0_0] : memref<128x16xf32, #tpu.memory_space<vmem>>, vector<128x16xf32>
    %c0_1 = arith.constant 0 : index
    %c0_2 = arith.constant 0 : index
    %1 = vector.load %arg2[%c0_1, %c0_2] : memref<16x8xf32, #tpu.memory_space<vmem>>, vector<16x8xf32>
    %cst = arith.constant dense<0.000000e+00> : vector<128x8xf32>
    %2 = tpu.matmul %0, %1, %cst {dimension_numbers = #tpu.dot_dimension_numbers<[1], [0], [0], [1], [0, 0, 1, 1], [], []>} : vector<128x16xf32>, vector<16x8xf32>, vector<128x8xf32> -> vector<128x8xf32>
    %c0_3 = arith.constant 0 : index
    %c0_4 = arith.constant 0 : index
    %3 = vector.load %arg3[%c0_3, %c0_4] : memref<1x8xf32, #tpu.memory_space<vmem>>, vector<1x8xf32>
    %4 = vector.broadcast %3 : vector<1x8xf32> to vector<128x8xf32>
    %5 = arith.mulf %2, %4 : vector<128x8xf32>
    %c0_5 = arith.constant 0 : index
    %c0_6 = arith.constant 0 : index
    %6 = vector.load %arg4[%c0_5, %c0_6] : memref<1x8xf32, #tpu.memory_space<vmem>>, vector<1x8xf32>
    %7 = vector.broadcast %6 : vector<1x8xf32> to vector<128x8xf32>
    %8 = arith.addf %5, %7 : vector<128x8xf32>
    %cst_7 = arith.constant 0.000000e+00 : f32
    %9 = vector.broadcast %cst_7 : f32 to vector<128x8xf32>
    %10 = arith.cmpf oge, %8, %9 : vector<128x8xf32>
    %cst_8 = arith.constant 0.00999999977 : f32
    %11 = vector.broadcast %cst_8 : f32 to vector<128x8xf32>
    %12 = arith.mulf %11, %8 : vector<128x8xf32>
    %13 = arith.select %10, %8, %12 : vector<128x8xi1>, vector<128x8xf32>
    %c0_9 = arith.constant 0 : index
    %c0_10 = arith.constant 0 : index
    %14 = vector.load %arg5[%c0_9, %c0_10] : memref<128x8xf32, #tpu.memory_space<vmem>>, vector<128x8xf32>
    tpu.vector_store %arg5[%c0_9, %c0_10], %13 {strides = array<i32>} : memref<128x8xf32, #tpu.memory_space<vmem>>, vector<128x8xf32>,
    return
  }
  func.func @transform_0(%arg0: i32) -> (i32, i32) {
    %c0_i32 = arith.constant 0 : i32
    %c0_i32_0 = arith.constant 0 : i32
    return %arg0, %c0_i32 : i32, i32
  }
  func.func @transform_1(%arg0: i32) -> (i32, i32) {
    %c0_i32 = arith.constant 0 : i32
    %c0_i32_0 = arith.constant 0 : i32
    %c0_i32_1 = arith.constant 0 : i32
    return %c0_i32, %c0_i32_0 : i32, i32
  }
  func.func @transform_2(%arg0: i32) -> (i32, i32) {
    %c0_i32 = arith.constant 0 : i32
    %c0_i32_0 = arith.constant 0 : i32
    %c0_i32_1 = arith.constant 0 : i32
    return %c0_i32, %c0_i32_0 : i32, i32
  }
  func.func @transform_3(%arg0: i32) -> (i32, i32) {
    %c0_i32 = arith.constant 0 : i32
    %c0_i32_0 = arith.constant 0 : i32
    %c0_i32_1 = arith.constant 0 : i32
    return %c0_i32, %c0_i32_0 : i32, i32
  }
  func.func @transform_4(%arg0: i32) -> (i32, i32) {
    %c0_i32 = arith.constant 0 : i32
    %c0_i32_0 = arith.constant 0 : i32
    return %arg0, %c0_i32 : i32, i32
  }
}

module attributes {stable_mosaic.version = 11 : i64} {
  func.func @_conv_mm_kernel(%arg0: i32, %arg1: memref<128x72xf32, #tpu.memory_space<vmem>>, %arg2: memref<72x16xf32, #tpu.memory_space<vmem>>, %arg3: memref<1x16xf32, #tpu.memory_space<vmem>>, %arg4: memref<1x16xf32, #tpu.memory_space<vmem>>, %arg5: memref<128x16xf32, #tpu.memory_space<vmem>>) attributes {dimension_semantics = [#tpu.dimension_semantics<parallel>], iteration_bounds = array<i64: 1>, scalar_prefetch = 0 : i64, scratch_operands = 0 : i64, tpu.core_type = #tpu.core_type<tc>, window_params = [{transform_indices = @transform_0, window_bounds = array<i64: 128, 72>}, {pipeline_mode = #tpu.pipeline_mode<synchronous>, transform_indices = @transform_1, window_bounds = array<i64: 72, 16>}, {pipeline_mode = #tpu.pipeline_mode<synchronous>, transform_indices = @transform_2, window_bounds = array<i64: 1, 16>}, {pipeline_mode = #tpu.pipeline_mode<synchronous>, transform_indices = @transform_3, window_bounds = array<i64: 1, 16>}, {transform_indices = @transform_4, window_bounds = array<i64: 128, 16>}]} {
    %c0 = arith.constant 0 : index
    %c0_0 = arith.constant 0 : index
    %0 = vector.load %arg1[%c0, %c0_0] : memref<128x72xf32, #tpu.memory_space<vmem>>, vector<128x72xf32>
    %c0_1 = arith.constant 0 : index
    %c0_2 = arith.constant 0 : index
    %1 = vector.load %arg2[%c0_1, %c0_2] : memref<72x16xf32, #tpu.memory_space<vmem>>, vector<72x16xf32>
    %cst = arith.constant dense<0.000000e+00> : vector<128x16xf32>
    %2 = tpu.matmul %0, %1, %cst {dimension_numbers = #tpu.dot_dimension_numbers<[1], [0], [0], [1], [0, 0, 1, 1], [], []>} : vector<128x72xf32>, vector<72x16xf32>, vector<128x16xf32> -> vector<128x16xf32>
    %c0_3 = arith.constant 0 : index
    %c0_4 = arith.constant 0 : index
    %3 = vector.load %arg3[%c0_3, %c0_4] : memref<1x16xf32, #tpu.memory_space<vmem>>, vector<1x16xf32>
    %4 = vector.broadcast %3 : vector<1x16xf32> to vector<128x16xf32>
    %5 = arith.mulf %2, %4 : vector<128x16xf32>
    %c0_5 = arith.constant 0 : index
    %c0_6 = arith.constant 0 : index
    %6 = vector.load %arg4[%c0_5, %c0_6] : memref<1x16xf32, #tpu.memory_space<vmem>>, vector<1x16xf32>
    %7 = vector.broadcast %6 : vector<1x16xf32> to vector<128x16xf32>
    %8 = arith.addf %5, %7 : vector<128x16xf32>
    %cst_7 = arith.constant 0.000000e+00 : f32
    %9 = vector.broadcast %cst_7 : f32 to vector<128x16xf32>
    %10 = arith.cmpf oge, %8, %9 : vector<128x16xf32>
    %cst_8 = arith.constant 0.00999999977 : f32
    %11 = vector.broadcast %cst_8 : f32 to vector<128x16xf32>
    %12 = arith.mulf %11, %8 : vector<128x16xf32>
    %13 = arith.select %10, %8, %12 : vector<128x16xi1>, vector<128x16xf32>
    %c0_9 = arith.constant 0 : index
    %c0_10 = arith.constant 0 : index
    %14 = vector.load %arg5[%c0_9, %c0_10] : memref<128x16xf32, #tpu.memory_space<vmem>>, vector<128x16xf32>
    tpu.vector_store %arg5[%c0_9, %c0_10], %13 {strides = array<i32>} : memref<128x16xf32, #tpu.memory_space<vmem>>, vector<128x16xf32>,
    return
  }
  func.func @transform_0(%arg0: i32) -> (i32, i32) {
    %c0_i32 = arith.constant 0 : i32
    %c0_i32_0 = arith.constant 0 : i32
    return %arg0, %c0_i32 : i32, i32
  }
  func.func @transform_1(%arg0: i32) -> (i32, i32) {
    %c0_i32 = arith.constant 0 : i32
    %c0_i32_0 = arith.constant 0 : i32
    %c0_i32_1 = arith.constant 0 : i32
    return %c0_i32, %c0_i32_0 : i32, i32
  }
  func.func @transform_2(%arg0: i32) -> (i32, i32) {
    %c0_i32 = arith.constant 0 : i32
    %c0_i32_0 = arith.constant 0 : i32
    %c0_i32_1 = arith.constant 0 : i32
    return %c0_i32, %c0_i32_0 : i32, i32
  }
  func.func @transform_3(%arg0: i32) -> (i32, i32) {
    %c0_i32 = arith.constant 0 : i32
    %c0_i32_0 = arith.constant 0 : i32
    %c0_i32_1 = arith.constant 0 : i32
    return %c0_i32, %c0_i32_0 : i32, i32
  }
  func.func @transform_4(%arg0: i32) -> (i32, i32) {
    %c0_i32 = arith.constant 0 : i32
    %c0_i32_0 = arith.constant 0 : i32
    return %arg0, %c0_i32 : i32, i32
  }
}

module attributes {stable_mosaic.version = 11 : i64} {
  func.func @_maxpool_kernel(%arg0: i32, %arg1: memref<4x8x32xf32, #tpu.memory_space<vmem>>, %arg2: memref<8x32xf32, #tpu.memory_space<vmem>>) attributes {dimension_semantics = [#tpu.dimension_semantics<parallel>], iteration_bounds = array<i64: 1>, scalar_prefetch = 0 : i64, scratch_operands = 0 : i64, tpu.core_type = #tpu.core_type<tc>, window_params = [{transform_indices = @transform_0, window_bounds = array<i64: 4, 8, 32>}, {transform_indices = @transform_1, window_bounds = array<i64: 8, 32>}]} {
    %c0 = arith.constant 0 : index
    %c0_0 = arith.constant 0 : index
    %c0_1 = arith.constant 0 : index
    %0 = vector.load %arg1[%c0, %c0_0, %c0_1] : memref<4x8x32xf32, #tpu.memory_space<vmem>>, vector<1x8x32xf32>
    %1 = vector.shape_cast %0 : vector<1x8x32xf32> to vector<8x32xf32>
    %c1 = arith.constant 1 : index
    %c0_2 = arith.constant 0 : index
    %c0_3 = arith.constant 0 : index
    %2 = vector.load %arg1[%c1, %c0_2, %c0_3] : memref<4x8x32xf32, #tpu.memory_space<vmem>>, vector<1x8x32xf32>
    %3 = vector.shape_cast %2 : vector<1x8x32xf32> to vector<8x32xf32>
    %4 = arith.maximumf %1, %3 : vector<8x32xf32>
    %c2 = arith.constant 2 : index
    %c0_4 = arith.constant 0 : index
    %c0_5 = arith.constant 0 : index
    %5 = vector.load %arg1[%c2, %c0_4, %c0_5] : memref<4x8x32xf32, #tpu.memory_space<vmem>>, vector<1x8x32xf32>
    %6 = vector.shape_cast %5 : vector<1x8x32xf32> to vector<8x32xf32>
    %7 = arith.maximumf %4, %6 : vector<8x32xf32>
    %c3 = arith.constant 3 : index
    %c0_6 = arith.constant 0 : index
    %c0_7 = arith.constant 0 : index
    %8 = vector.load %arg1[%c3, %c0_6, %c0_7] : memref<4x8x32xf32, #tpu.memory_space<vmem>>, vector<1x8x32xf32>
    %9 = vector.shape_cast %8 : vector<1x8x32xf32> to vector<8x32xf32>
    %10 = arith.maximumf %7, %9 : vector<8x32xf32>
    %c0_8 = arith.constant 0 : index
    %c0_9 = arith.constant 0 : index
    %11 = vector.load %arg2[%c0_8, %c0_9] : memref<8x32xf32, #tpu.memory_space<vmem>>, vector<8x32xf32>
    tpu.vector_store %arg2[%c0_8, %c0_9], %10 {strides = array<i32>} : memref<8x32xf32, #tpu.memory_space<vmem>>, vector<8x32xf32>,
    return
  }
  func.func @transform_0(%arg0: i32) -> (i32, i32, i32) {
    %c0_i32 = arith.constant 0 : i32
    %c0_i32_0 = arith.constant 0 : i32
    %c0_i32_1 = arith.constant 0 : i32
    return %c0_i32, %arg0, %c0_i32_0 : i32, i32, i32
  }
  func.func @transform_1(%arg0: i32) -> (i32, i32) {
    %c0_i32 = arith.constant 0 : i32
    %c0_i32_0 = arith.constant 0 : i32
    return %arg0, %c0_i32 : i32, i32
  }
}

module attributes {stable_mosaic.version = 11 : i64} {
  func.func @_conv_mm_kernel(%arg0: i32, %arg1: memref<32x144xf32, #tpu.memory_space<vmem>>, %arg2: memref<144x32xf32, #tpu.memory_space<vmem>>, %arg3: memref<1x32xf32, #tpu.memory_space<vmem>>, %arg4: memref<1x32xf32, #tpu.memory_space<vmem>>, %arg5: memref<32x32xf32, #tpu.memory_space<vmem>>) attributes {dimension_semantics = [#tpu.dimension_semantics<parallel>], iteration_bounds = array<i64: 1>, scalar_prefetch = 0 : i64, scratch_operands = 0 : i64, tpu.core_type = #tpu.core_type<tc>, window_params = [{transform_indices = @transform_0, window_bounds = array<i64: 32, 144>}, {pipeline_mode = #tpu.pipeline_mode<synchronous>, transform_indices = @transform_1, window_bounds = array<i64: 144, 32>}, {pipeline_mode = #tpu.pipeline_mode<synchronous>, transform_indices = @transform_2, window_bounds = array<i64: 1, 32>}, {pipeline_mode = #tpu.pipeline_mode<synchronous>, transform_indices = @transform_3, window_bounds = array<i64: 1, 32>}, {transform_indices = @transform_4, window_bounds = array<i64: 32, 32>}]} {
    %c0 = arith.constant 0 : index
    %c0_0 = arith.constant 0 : index
    %0 = vector.load %arg1[%c0, %c0_0] : memref<32x144xf32, #tpu.memory_space<vmem>>, vector<32x144xf32>
    %c0_1 = arith.constant 0 : index
    %c0_2 = arith.constant 0 : index
    %1 = vector.load %arg2[%c0_1, %c0_2] : memref<144x32xf32, #tpu.memory_space<vmem>>, vector<144x32xf32>
    %cst = arith.constant dense<0.000000e+00> : vector<32x32xf32>
    %2 = tpu.matmul %0, %1, %cst {dimension_numbers = #tpu.dot_dimension_numbers<[1], [0], [0], [1], [0, 0, 1, 1], [], []>} : vector<32x144xf32>, vector<144x32xf32>, vector<32x32xf32> -> vector<32x32xf32>
    %c0_3 = arith.constant 0 : index
    %c0_4 = arith.constant 0 : index
    %3 = vector.load %arg3[%c0_3, %c0_4] : memref<1x32xf32, #tpu.memory_space<vmem>>, vector<1x32xf32>
    %4 = vector.broadcast %3 : vector<1x32xf32> to vector<32x32xf32>
    %5 = arith.mulf %2, %4 : vector<32x32xf32>
    %c0_5 = arith.constant 0 : index
    %c0_6 = arith.constant 0 : index
    %6 = vector.load %arg4[%c0_5, %c0_6] : memref<1x32xf32, #tpu.memory_space<vmem>>, vector<1x32xf32>
    %7 = vector.broadcast %6 : vector<1x32xf32> to vector<32x32xf32>
    %8 = arith.addf %5, %7 : vector<32x32xf32>
    %cst_7 = arith.constant 0.000000e+00 : f32
    %9 = vector.broadcast %cst_7 : f32 to vector<32x32xf32>
    %10 = arith.cmpf oge, %8, %9 : vector<32x32xf32>
    %cst_8 = arith.constant 0.00999999977 : f32
    %11 = vector.broadcast %cst_8 : f32 to vector<32x32xf32>
    %12 = arith.mulf %11, %8 : vector<32x32xf32>
    %13 = arith.select %10, %8, %12 : vector<32x32xi1>, vector<32x32xf32>
    %c0_9 = arith.constant 0 : index
    %c0_10 = arith.constant 0 : index
    %14 = vector.load %arg5[%c0_9, %c0_10] : memref<32x32xf32, #tpu.memory_space<vmem>>, vector<32x32xf32>
    tpu.vector_store %arg5[%c0_9, %c0_10], %13 {strides = array<i32>} : memref<32x32xf32, #tpu.memory_space<vmem>>, vector<32x32xf32>,
    return
  }
  func.func @transform_0(%arg0: i32) -> (i32, i32) {
    %c0_i32 = arith.constant 0 : i32
    %c0_i32_0 = arith.constant 0 : i32
    return %arg0, %c0_i32 : i32, i32
  }
  func.func @transform_1(%arg0: i32) -> (i32, i32) {
    %c0_i32 = arith.constant 0 : i32
    %c0_i32_0 = arith.constant 0 : i32
    %c0_i32_1 = arith.constant 0 : i32
    return %c0_i32, %c0_i32_0 : i32, i32
  }
  func.func @transform_2(%arg0: i32) -> (i32, i32) {
    %c0_i32 = arith.constant 0 : i32
    %c0_i32_0 = arith.constant 0 : i32
    %c0_i32_1 = arith.constant 0 : i32
    return %c0_i32, %c0_i32_0 : i32, i32
  }
  func.func @transform_3(%arg0: i32) -> (i32, i32) {
    %c0_i32 = arith.constant 0 : i32
    %c0_i32_0 = arith.constant 0 : i32
    %c0_i32_1 = arith.constant 0 : i32
    return %c0_i32, %c0_i32_0 : i32, i32
  }
  func.func @transform_4(%arg0: i32) -> (i32, i32) {
    %c0_i32 = arith.constant 0 : i32
    %c0_i32_0 = arith.constant 0 : i32
    return %arg0, %c0_i32 : i32, i32
  }
}

</mosaic_0001>

<llo_original>
// kernel: _lambda_.9
$region0: #{_lambda_.9}
  #allocation0 [shape = 'u32[]', space=smem, size = 0x4, offset = 0x4, fixed_abs, tag = 'smem constant byte address 0x4 - core index']
  #allocation1 [shape = 'u32[72,128]{1,0:T(1,128)}', space=vmem, size = 0x9000, scoped, tag = 'internal scratch']
  %s0 = inlined_call_operand.vmem [shape: f32[4,128,16], index: 0, kind: input, shape index: {}]
  %s1 = inlined_call_operand.vmem [shape: f32[128,16], index: 1, kind: output, shape index: {}]
  %s2 = sld [smem:[#allocation0]]
  $region14: #{_lambda_.9} parent=0
    _
  %s4 = ssub.s32 1, %s2
  %s5 = scalar_select 0, %s4, %s2
  // Predicated region
  $region2: #{_lambda_.9} parent=0 // pred_check
    _
  $region3: #{_lambda_.9} parent=0 // pred_check_branch
    %7 = sbr.rel (0) target = $region5
  $region4: #{_lambda_.9} parent=0 // pred_region
    _
  $region5: #{_lambda_.9} parent=0 // pred_fallthru
    _
  %v8 = vld [vmem:[%s0] sm:$0xff]
  %v9 = vld [vmem:[%s0 + $0x8] sm:$0xff]
  %v10 = vld [vmem:[%s0 + $0x10] sm:$0xff]
  %v11 = vld [vmem:[%s0 + $0x18] sm:$0xff]
  %v12 = vld [vmem:[%s0 + $0x20] sm:$0xff]
  %v13 = vld [vmem:[%s0 + $0x28] sm:$0xff]
  %v14 = vld [vmem:[%s0 + $0x30] sm:$0xff]
  %v15 = vld [vmem:[%s0 + $0x38] sm:$0xff]
  %v16 = vld [vmem:[%s0 + $0x40] sm:$0xff]
  %v17 = vld [vmem:[%s0 + $0x48] sm:$0xff]
  %v18 = vld [vmem:[%s0 + $0x50] sm:$0xff]
  %v19 = vld [vmem:[%s0 + $0x58] sm:$0xff]
  %v20 = vld [vmem:[%s0 + $0x60] sm:$0xff]
  %v21 = vld [vmem:[%s0 + $0x68] sm:$0xff]
  %v22 = vld [vmem:[%s0 + $0x70] sm:$0xff]
  %v23 = vld [vmem:[%s0 + $0x78] sm:$0xff]
  %s24 = scalar_lea.vmem %s0, 128
  %v25 = vld [vmem:[%s24] sm:$0xff]
  %v26 = vld [vmem:[%s24 + $0x8] sm:$0xff]
  %v27 = vld [vmem:[%s24 + $0x10] sm:$0xff]
  %v28 = vld [vmem:[%s24 + $0x18] sm:$0xff]
  %v29 = vld [vmem:[%s24 + $0x20] sm:$0xff]
  %v30 = vld [vmem:[%s24 + $0x28] sm:$0xff]
  %v31 = vld [vmem:[%s24 + $0x30] sm:$0xff]
  %v32 = vld [vmem:[%s24 + $0x38] sm:$0xff]
  %v33 = vld [vmem:[%s24 + $0x40] sm:$0xff]
  %v34 = vld [vmem:[%s24 + $0x48] sm:$0xff]
  %v35 = vld [vmem:[%s24 + $0x50] sm:$0xff]
  %v36 = vld [vmem:[%s24 + $0x58] sm:$0xff]
  %v37 = vld [vmem:[%s24 + $0x60] sm:$0xff]
  %v38 = vld [vmem:[%s24 + $0x68] sm:$0xff]
  %v39 = vld [vmem:[%s24 + $0x70] sm:$0xff]
  %v40 = vld [vmem:[%s24 + $0x78] sm:$0xff]
  %v41 = vmax.f32 %v8, %v25
  %v42 = vmax.f32 %v9, %v26
  %v43 = vmax.f32 %v10, %v27
  %v44 = vmax.f32 %v11, %v28
  %v45 = vmax.f32 %v12, %v29
  %v46 = vmax.f32 %v13, %v30
  %v47 = vmax.f32 %v14, %v31
  %v48 = vmax.f32 %v15, %v32
  %v49 = vmax.f32 %v16, %v33
  %v50 = vmax.f32 %v17, %v34
  %v51 = vmax.f32 %v18, %v35
  %v52 = vmax.f32 %v19, %v36
  %v53 = vmax.f32 %v20, %v37
  %v54 = vmax.f32 %v21, %v38
  %v55 = vmax.f32 %v22, %v39
  %v56 = vmax.f32 %v23, %v40
  %s57 = scalar_lea.vmem %s0, 256
  %v58 = vld [vmem:[%s57] sm:$0xff]
  %v59 = vld [vmem:[%s57 + $0x8] sm:$0xff]
  %v60 = vld [vmem:[%s57 + $0x10] sm:$0xff]
  %v61 = vld [vmem:[%s57 + $0x18] sm:$0xff]
  %v62 = vld [vmem:[%s57 + $0x20] sm:$0xff]
  %v63 = vld [vmem:[%s57 + $0x28] sm:$0xff]
  %v64 = vld [vmem:[%s57 + $0x30] sm:$0xff]
  %v65 = vld [vmem:[%s57 + $0x38] sm:$0xff]
  %v66 = vld [vmem:[%s57 + $0x40] sm:$0xff]
  %v67 = vld [vmem:[%s57 + $0x48] sm:$0xff]
  %v68 = vld [vmem:[%s57 + $0x50] sm:$0xff]
  %v69 = vld [vmem:[%s57 + $0x58] sm:$0xff]
  %v70 = vld [vmem:[%s57 + $0x60] sm:$0xff]
  %v71 = vld [vmem:[%s57 + $0x68] sm:$0xff]
  %v72 = vld [vmem:[%s57 + $0x70] sm:$0xff]
  %v73 = vld [vmem:[%s57 + $0x78] sm:$0xff]
  %v74 = vmax.f32 %v41, %v58
  %v75 = vmax.f32 %v42, %v59
  %v76 = vmax.f32 %v43, %v60
  %v77 = vmax.f32 %v44, %v61
  %v78 = vmax.f32 %v45, %v62
  %v79 = vmax.f32 %v46, %v63
  %v80 = vmax.f32 %v47, %v64
  %v81 = vmax.f32 %v48, %v65
  %v82 = vmax.f32 %v49, %v66
  %v83 = vmax.f32 %v50, %v67
  %v84 = vmax.f32 %v51, %v68
  %v85 = vmax.f32 %v52, %v69
  %v86 = vmax.f32 %v53, %v70
  %v87 = vmax.f32 %v54, %v71
  %v88 = vmax.f32 %v55, %v72
  %v89 = vmax.f32 %v56, %v73
  %s90 = scalar_lea.vmem %s0, 384
  %v91 = vld [vmem:[%s90] sm:$0xff]
  %v92 = vld [vmem:[%s90 + $0x8] sm:$0xff]
  %v93 = vld [vmem:[%s90 + $0x10] sm:$0xff]
  %v94 = vld [vmem:[%s90 + $0x18] sm:$0xff]
  %v95 = vld [vmem:[%s90 + $0x20] sm:$0xff]
  %v96 = vld [vmem:[%s90 + $0x28] sm:$0xff]
  %v97 = vld [vmem:[%s90 + $0x30] sm:$0xff]
  %v98 = vld [vmem:[%s90 + $0x38] sm:$0xff]
  %v99 = vld [vmem:[%s90 + $0x40] sm:$0xff]
  %v100 = vld [vmem:[%s90 + $0x48] sm:$0xff]
  %v101 = vld [vmem:[%s90 + $0x50] sm:$0xff]
  %v102 = vld [vmem:[%s90 + $0x58] sm:$0xff]
  %v103 = vld [vmem:[%s90 + $0x60] sm:$0xff]
  %v104 = vld [vmem:[%s90 + $0x68] sm:$0xff]
  %v105 = vld [vmem:[%s90 + $0x70] sm:$0xff]
  %v106 = vld [vmem:[%s90 + $0x78] sm:$0xff]
  %v107 = vmax.f32 %v74, %v91
  %v108 = vmax.f32 %v75, %v92
  %v109 = vmax.f32 %v76, %v93
  %v110 = vmax.f32 %v77, %v94
  %v111 = vmax.f32 %v78, %v95
  %v112 = vmax.f32 %v79, %v96
  %v113 = vmax.f32 %v80, %v97
  %v114 = vmax.f32 %v81, %v98
  %v115 = vmax.f32 %v82, %v99
  %v116 = vmax.f32 %v83, %v100
  %v117 = vmax.f32 %v84, %v101
  %v118 = vmax.f32 %v85, %v102
  %v119 = vmax.f32 %v86, %v103
  %v120 = vmax.f32 %v87, %v104
  %v121 = vmax.f32 %v88, %v105
  %v122 = vmax.f32 %v89, %v106
  %vm123 = vcmask 130048
  %124 = vst.msk [vmem:[%s1] sm:$0xff] %vm123, %v107
  %125 = vst.msk [vmem:[%s1 + $0x8] sm:$0xff] %vm123, %v108
  %126 = vst.msk [vmem:[%s1 + $0x10] sm:$0xff] %vm123, %v109
  %127 = vst.msk [vmem:[%s1 + $0x18] sm:$0xff] %vm123, %v110
  %128 = vst.msk [vmem:[%s1 + $0x20] sm:$0xff] %vm123, %v111
  %129 = vst.msk [vmem:[%s1 + $0x28] sm:$0xff] %vm123, %v112
  %130 = vst.msk [vmem:[%s1 + $0x30] sm:$0xff] %vm123, %v113
  %131 = vst.msk [vmem:[%s1 + $0x38] sm:$0xff] %vm123, %v114
  %132 = vst.msk [vmem:[%s1 + $0x40] sm:$0xff] %vm123, %v115
  %133 = vst.msk [vmem:[%s1 + $0x48] sm:$0xff] %vm123, %v116
  %134 = vst.msk [vmem:[%s1 + $0x50] sm:$0xff] %vm123, %v117
  %135 = vst.msk [vmem:[%s1 + $0x58] sm:$0xff] %vm123, %v118
  %136 = vst.msk [vmem:[%s1 + $0x60] sm:$0xff] %vm123, %v119
  %137 = vst.msk [vmem:[%s1 + $0x68] sm:$0xff] %vm123, %v120
  %138 = vst.msk [vmem:[%s1 + $0x70] sm:$0xff] %vm123, %v121
  %139 = vst.msk [vmem:[%s1 + $0x78] sm:$0xff] %vm123, %v122
  // Predicated region
  $region6: #{_lambda_.9} parent=0 // pred_check
    _
  $region7: #{_lambda_.9} parent=0 // pred_check_branch
    %141 = sbr.rel (0) target = $region9
  $region8: #{_lambda_.9} parent=0 // pred_region
    _
  $region9: #{_lambda_.9} parent=0 // pred_fallthru
    _
  // Predicated region
  $region10: #{_lambda_.9} parent=0 // pred_check
    _
  $region11: #{_lambda_.9} parent=0 // pred_check_branch
    %143 = sbr.rel (0) target = $region13
  $region12: #{_lambda_.9} parent=0 // pred_region
    _
  $region13: #{_lambda_.9} parent=0 // pred_fallthru
    _

// kernel: _lambda_.8
$region0: #{_lambda_.8}
  #allocation0 [shape = 'u32[]', space=smem, size = 0x4, offset = 0x4, fixed_abs, tag = 'smem constant byte address 0x4 - core index']
  #allocation1 [shape = 'u32[72,128]{1,0:T(1,128)}', space=vmem, size = 0x9000, scoped, tag = 'internal scratch']
  %s0 = inlined_call_operand.vmem [shape: f32[512,36], index: 0, kind: input, shape index: {}]
  %s1 = inlined_call_operand.vmem [shape: f32[36,16], index: 1, kind: input, shape index: {}]
  %s2 = inlined_call_operand.vmem [shape: f32[1,16], index: 2, kind: input, shape index: {}]
  %s3 = inlined_call_operand.vmem [shape: f32[1,16], index: 3, kind: input, shape index: {}]
  %s4 = inlined_call_operand.vmem [shape: f32[512,16], index: 4, kind: output, shape index: {}]
  %s5 = sld [smem:[#allocation0]]
  $region26: #{_lambda_.8} parent=0
    _
  %s7 = ssub.s32 1, %s5
  %s8 = scalar_select 0, %s7, %s5
  // Predicated region
  $region2: #{_lambda_.8} parent=0 // pred_check
    _
  $region3: #{_lambda_.8} parent=0 // pred_check_branch
    %10 = sbr.rel (0) target = $region5
  $region4: #{_lambda_.8} parent=0 // pred_region
    _
  $region5: #{_lambda_.8} parent=0 // pred_fallthru
    _
  // Predicated region
  $region6: #{_lambda_.8} parent=0 // pred_check
    _
  $region7: #{_lambda_.8} parent=0 // pred_check_branch
    %12 = sbr.rel (0) target = $region9
  $region8: #{_lambda_.8} parent=0 // pred_region
    _
  $region9: #{_lambda_.8} parent=0 // pred_fallthru
    _
  // Predicated region
  $region10: #{_lambda_.8} parent=0 // pred_check
    _
  $region11: #{_lambda_.8} parent=0 // pred_check_branch
    %14 = sbr.rel (0) target = $region13
  $region12: #{_lambda_.8} parent=0 // pred_region
    _
  $region13: #{_lambda_.8} parent=0 // pred_fallthru
    _
  // Predicated region
  $region14: #{_lambda_.8} parent=0 // pred_check
    _
  $region15: #{_lambda_.8} parent=0 // pred_check_branch
    %16 = sbr.rel (0) target = $region17
  $region16: #{_lambda_.8} parent=0 // pred_region
    _
  $region17: #{_lambda_.8} parent=0 // pred_fallthru
    _
  %v17 = vld [vmem:[%s0] sm:$0xff]
  %v18 = vld [vmem:[%s0 + $0x8] sm:$0xff]
  %v19 = vld [vmem:[%s0 + $0x10] sm:$0xff]
  %v20 = vld [vmem:[%s0 + $0x18] sm:$0xff]
  %v21 = vld [vmem:[%s0 + $0x20] sm:$0xff]
  %v22 = vld [vmem:[%s0 + $0x28] sm:$0xff]
  %v23 = vld [vmem:[%s0 + $0x30] sm:$0xff]
  %v24 = vld [vmem:[%s0 + $0x38] sm:$0xff]
  %v25 = vld [vmem:[%s0 + $0x40] sm:$0xff]
  %v26 = vld [vmem:[%s0 + $0x48] sm:$0xff]
  %v27 = vld [vmem:[%s0 + $0x50] sm:$0xff]
  %v28 = vld [vmem:[%s0 + $0x58] sm:$0xff]
  %v29 = vld [vmem:[%s0 + $0x60] sm:$0xff]
  %v30 = vld [vmem:[%s0 + $0x68] sm:$0xff]
  %v31 = vld [vmem:[%s0 + $0x70] sm:$0xff]
  %v32 = vld [vmem:[%s0 + $0x78] sm:$0xff]
  %v33 = vld [vmem:[%s0 + $0x80] sm:$0xff]
  %v34 = vld [vmem:[%s0 + $0x88] sm:$0xff]
  %v35 = vld [vmem:[%s0 + $0x90] sm:$0xff]
  %v36 = vld [vmem:[%s0 + $0x98] sm:$0xff]
  %v37 = vld [vmem:[%s0 + $0xa0] sm:$0xff]
  %v38 = vld [vmem:[%s0 + $0xa8] sm:$0xff]
  %v39 = vld [vmem:[%s0 + $0xb0] sm:$0xff]
  %v40 = vld [vmem:[%s0 + $0xb8] sm:$0xff]
  %v41 = vld [vmem:[%s0 + $0xc0] sm:$0xff]
  %v42 = vld [vmem:[%s0 + $0xc8] sm:$0xff]
  %v43 = vld [vmem:[%s0 + $0xd0] sm:$0xff]
  %v44 = vld [vmem:[%s0 + $0xd8] sm:$0xff]
  %v45 = vld [vmem:[%s0 + $0xe0] sm:$0xff]
  %v46 = vld [vmem:[%s0 + $0xe8] sm:$0xff]
  %v47 = vld [vmem:[%s0 + $0xf0] sm:$0xff]
  %v48 = vld [vmem:[%s0 + $0xf8] sm:$0xff]
  %v49 = vld [vmem:[%s0 + $0x100] sm:$0xff]
  %v50 = vld [vmem:[%s0 + $0x108] sm:$0xff]
  %v51 = vld [vmem:[%s0 + $0x110] sm:$0xff]
  %v52 = vld [vmem:[%s0 + $0x118] sm:$0xff]
  %v53 = vld [vmem:[%s0 + $0x120] sm:$0xff]
  %v54 = vld [vmem:[%s0 + $0x128] sm:$0xff]
  %v55 = vld [vmem:[%s0 + $0x130] sm:$0xff]
  %v56 = vld [vmem:[%s0 + $0x138] sm:$0xff]
  %v57 = vld [vmem:[%s0 + $0x140] sm:$0xff]
  %v58 = vld [vmem:[%s0 + $0x148] sm:$0xff]
  %v59 = vld [vmem:[%s0 + $0x150] sm:$0xff]
  %v60 = vld [vmem:[%s0 + $0x158] sm:$0xff]
  %v61 = vld [vmem:[%s0 + $0x160] sm:$0xff]
  %v62 = vld [vmem:[%s0 + $0x168] sm:$0xff]
  %v63 = vld [vmem:[%s0 + $0x170] sm:$0xff]
  %v64 = vld [vmem:[%s0 + $0x178] sm:$0xff]
  %v65 = vld [vmem:[%s0 + $0x180] sm:$0xff]
  %v66 = vld [vmem:[%s0 + $0x188] sm:$0xff]
  %v67 = vld [vmem:[%s0 + $0x190] sm:$0xff]
  %v68 = vld [vmem:[%s0 + $0x198] sm:$0xff]
  %v69 = vld [vmem:[%s0 + $0x1a0] sm:$0xff]
  %v70 = vld [vmem:[%s0 + $0x1a8] sm:$0xff]
  %v71 = vld [vmem:[%s0 + $0x1b0] sm:$0xff]
  %v72 = vld [vmem:[%s0 + $0x1b8] sm:$0xff]
  %v73 = vld [vmem:[%s0 + $0x1c0] sm:$0xff]
  %v74 = vld [vmem:[%s0 + $0x1c8] sm:$0xff]
  %v75 = vld [vmem:[%s0 + $0x1d0] sm:$0xff]
  %v76 = vld [vmem:[%s0 + $0x1d8] sm:$0xff]
  %v77 = vld [vmem:[%s0 + $0x1e0] sm:$0xff]
  %v78 = vld [vmem:[%s0 + $0x1e8] sm:$0xff]
  %v79 = vld [vmem:[%s0 + $0x1f0] sm:$0xff]
  %v80 = vld [vmem:[%s0 + $0x1f8] sm:$0xff]
  %v81 = vld [vmem:[%s1] sm:$0xff]
  %v82 = vld [vmem:[%s1 + $0x8] sm:$0xff]
  %v83 = vld [vmem:[%s1 + $0x10] sm:$0xff]
  %v84 = vld [vmem:[%s1 + $0x18] sm:$0xff]
  %v85 = vld [vmem:[%s1 + $0x20] sm:$0xf]
  %vm86 = vcmask 293888
  %v88 = vsel %vm86, %v17, 0
  %v91 = vsel %vm86, %v18, 0
  %v94 = vsel %vm86, %v19, 0
  %v97 = vsel %vm86, %v20, 0
  %v100 = vsel %vm86, %v21, 0
  %v103 = vsel %vm86, %v22, 0
  %v106 = vsel %vm86, %v23, 0
  %v109 = vsel %vm86, %v24, 0
  %v112 = vsel %vm86, %v25, 0
  %v115 = vsel %vm86, %v26, 0
  %v118 = vsel %vm86, %v27, 0
  %v121 = vsel %vm86, %v28, 0
  %v124 = vsel %vm86, %v29, 0
  %v127 = vsel %vm86, %v30, 0
  %v130 = vsel %vm86, %v31, 0
  %v133 = vsel %vm86, %v32, 0
  %v136 = vsel %vm86, %v33, 0
  %v139 = vsel %vm86, %v34, 0
  %v142 = vsel %vm86, %v35, 0
  %v145 = vsel %vm86, %v36, 0
  %v148 = vsel %vm86, %v37, 0
  %v151 = vsel %vm86, %v38, 0
  %v154 = vsel %vm86, %v39, 0
  %v157 = vsel %vm86, %v40, 0
  %v160 = vsel %vm86, %v41, 0
  %v163 = vsel %vm86, %v42, 0
  %v166 = vsel %vm86, %v43, 0
  %v169 = vsel %vm86, %v44, 0
  %v172 = vsel %vm86, %v45, 0
  %v175 = vsel %vm86, %v46, 0
  %v178 = vsel %vm86, %v47, 0
  %v181 = vsel %vm86, %v48, 0
  %v184 = vsel %vm86, %v49, 0
  %v187 = vsel %vm86, %v50, 0
  %v190 = vsel %vm86, %v51, 0
  %v193 = vsel %vm86, %v52, 0
  %v196 = vsel %vm86, %v53, 0
  %v199 = vsel %vm86, %v54, 0
  %v202 = vsel %vm86, %v55, 0
  %v205 = vsel %vm86, %v56, 0
  %v208 = vsel %vm86, %v57, 0
  %v211 = vsel %vm86, %v58, 0
  %v214 = vsel %vm86, %v59, 0
  %v217 = vsel %vm86, %v60, 0
  %v220 = vsel %vm86, %v61, 0
  %v223 = vsel %vm86, %v62, 0
  %v226 = vsel %vm86, %v63, 0
  %v229 = vsel %vm86, %v64, 0
  %v232 = vsel %vm86, %v65, 0
  %v235 = vsel %vm86, %v66, 0
  %v238 = vsel %vm86, %v67, 0
  %v241 = vsel %vm86, %v68, 0
  %v244 = vsel %vm86, %v69, 0
  %v247 = vsel %vm86, %v70, 0
  %v250 = vsel %vm86, %v71, 0
  %v253 = vsel %vm86, %v72, 0
  %v256 = vsel %vm86, %v73, 0
  %v259 = vsel %vm86, %v74, 0
  %v262 = vsel %vm86, %v75, 0
  %v265 = vsel %vm86, %v76, 0
  %v268 = vsel %vm86, %v77, 0
  %v271 = vsel %vm86, %v78, 0
  %v274 = vsel %vm86, %v79, 0
  %v277 = vsel %vm86, %v80, 0
  %vm279 = vcmask 1043456
  %v281 = vsel %vm279, %v85, 0
  %283 = vmatpush.msra.mxu0 0.0
  %284 = vmatpush.msra.mxu0 0.0
  %285 = vmatpush.msra.mxu0 0.0
  %286 = vmatpush.msra.mxu0 0.0
  %287 = vmatpush.msra.mxu0 0.0
  %288 = vmatpush.msra.mxu0 0.0
  %289 = vmatpush.msra.mxu0 0.0
  %290 = vmatpush.msra.mxu0 0.0
  %291 = vmatpush.msra.mxu0 0.0
  %292 = vmatpush.msra.mxu0 0.0
  %293 = vmatpush.msra.mxu0 0.0
  %294 = vmatpush.msra.mxu0 %v281
  %295 = vmatpush.msra.mxu0 %v84
  %296 = vmatpush.msra.mxu0 %v83
  %297 = vmatpush.msra.mxu0 %v82
  %298 = vmatpush.msra.mxu0 %v81
  %299 = vmatmul.f32.gmra.mxu0 %v88
  %v300 = vpop.f32.mrf.mxu0
  %v301 = vadd.f32 0.0, %v300
  %302 = vmatmul.f32.gmra.mxu0 %v91
  %v303 = vpop.f32.mrf.mxu0
  %v304 = vadd.f32 0.0, %v303
  %305 = vmatmul.f32.gmra.mxu0 %v94
  %v306 = vpop.f32.mrf.mxu0
  %v307 = vadd.f32 0.0, %v306
  %308 = vmatmul.f32.gmra.mxu0 %v97
  %v309 = vpop.f32.mrf.mxu0
  %v310 = vadd.f32 0.0, %v309
  %311 = vmatmul.f32.gmra.mxu0 %v100
  %v312 = vpop.f32.mrf.mxu0
  %v313 = vadd.f32 0.0, %v312
  %314 = vmatmul.f32.gmra.mxu0 %v103
  %v315 = vpop.f32.mrf.mxu0
  %v316 = vadd.f32 0.0, %v315
  %317 = vmatmul.f32.gmra.mxu0 %v106
  %v318 = vpop.f32.mrf.mxu0
  %v319 = vadd.f32 0.0, %v318
  %320 = vmatmul.f32.gmra.mxu0 %v109
  %v321 = vpop.f32.mrf.mxu0
  %v322 = vadd.f32 0.0, %v321
  %323 = vmatmul.f32.gmra.mxu0 %v112
  %v324 = vpop.f32.mrf.mxu0
  %v325 = vadd.f32 0.0, %v324
  %326 = vmatmul.f32.gmra.mxu0 %v115
  %v327 = vpop.f32.mrf.mxu0
  %v328 = vadd.f32 0.0, %v327
  %329 = vmatmul.f32.gmra.mxu0 %v118
  %v330 = vpop.f32.mrf.mxu0
  %v331 = vadd.f32 0.0, %v330
  %332 = vmatmul.f32.gmra.mxu0 %v121
  %v333 = vpop.f32.mrf.mxu0
  %v334 = vadd.f32 0.0, %v333
  %335 = vmatmul.f32.gmra.mxu0 %v124
  %v336 = vpop.f32.mrf.mxu0
  %v337 = vadd.f32 0.0, %v336
  %338 = vmatmul.f32.gmra.mxu0 %v127
  %v339 = vpop.f32.mrf.mxu0
  %v340 = vadd.f32 0.0, %v339
  %341 = vmatmul.f32.gmra.mxu0 %v130
  %v342 = vpop.f32.mrf.mxu0
  %v343 = vadd.f32 0.0, %v342
  %344 = vmatmul.f32.gmra.mxu0 %v133
  %v345 = vpop.f32.mrf.mxu0
  %v346 = vadd.f32 0.0, %v345
  %347 = vmatmul.f32.gmra.mxu0 %v136
  %v348 = vpop.f32.mrf.mxu0
  %v349 = vadd.f32 0.0, %v348
  %350 = vmatmul.f32.gmra.mxu0 %v139
  %v351 = vpop.f32.mrf.mxu0
  %v352 = vadd.f32 0.0, %v351
  %353 = vmatmul.f32.gmra.mxu0 %v142
  %v354 = vpop.f32.mrf.mxu0
  %v355 = vadd.f32 0.0, %v354
  %356 = vmatmul.f32.gmra.mxu0 %v145
  %v357 = vpop.f32.mrf.mxu0
  %v358 = vadd.f32 0.0, %v357
  %359 = vmatmul.f32.gmra.mxu0 %v148
  %v360 = vpop.f32.mrf.mxu0
  %v361 = vadd.f32 0.0, %v360
  %362 = vmatmul.f32.gmra.mxu0 %v151
  %v363 = vpop.f32.mrf.mxu0
  %v364 = vadd.f32 0.0, %v363
  %365 = vmatmul.f32.gmra.mxu0 %v154
  %v366 = vpop.f32.mrf.mxu0
  %v367 = vadd.f32 0.0, %v366
  %368 = vmatmul.f32.gmra.mxu0 %v157
  %v369 = vpop.f32.mrf.mxu0
  %v370 = vadd.f32 0.0, %v369
  %371 = vmatmul.f32.gmra.mxu0 %v160
  %v372 = vpop.f32.mrf.mxu0
  %v373 = vadd.f32 0.0, %v372
  %374 = vmatmul.f32.gmra.mxu0 %v163
  %v375 = vpop.f32.mrf.mxu0
  %v376 = vadd.f32 0.0, %v375
  %377 = vmatmul.f32.gmra.mxu0 %v166
  %v378 = vpop.f32.mrf.mxu0
  %v379 = vadd.f32 0.0, %v378
  %380 = vmatmul.f32.gmra.mxu0 %v169
  %v381 = vpop.f32.mrf.mxu0
  %v382 = vadd.f32 0.0, %v381
  %383 = vmatmul.f32.gmra.mxu0 %v172
  %v384 = vpop.f32.mrf.mxu0
  %v385 = vadd.f32 0.0, %v384
  %386 = vmatmul.f32.gmra.mxu0 %v175
  %v387 = vpop.f32.mrf.mxu0
  %v388 = vadd.f32 0.0, %v387
  %389 = vmatmul.f32.gmra.mxu0 %v178
  %v390 = vpop.f32.mrf.mxu0
  %v391 = vadd.f32 0.0, %v390
  %392 = vmatmul.f32.gmra.mxu0 %v181
  %v393 = vpop.f32.mrf.mxu0
  %v394 = vadd.f32 0.0, %v393
  %395 = vmatmul.f32.gmra.mxu0 %v184
  %v396 = vpop.f32.mrf.mxu0
  %v397 = vadd.f32 0.0, %v396
  %398 = vmatmul.f32.gmra.mxu0 %v187
  %v399 = vpop.f32.mrf.mxu0
  %v400 = vadd.f32 0.0, %v399
  %401 = vmatmul.f32.gmra.mxu0 %v190
  %v402 = vpop.f32.mrf.mxu0
  %v403 = vadd.f32 0.0, %v402
  %404 = vmatmul.f32.gmra.mxu0 %v193
  %v405 = vpop.f32.mrf.mxu0
  %v406 = vadd.f32 0.0, %v405
  %407 = vmatmul.f32.gmra.mxu0 %v196
  %v408 = vpop.f32.mrf.mxu0
  %v409 = vadd.f32 0.0, %v408
  %410 = vmatmul.f32.gmra.mxu0 %v199
  %v411 = vpop.f32.mrf.mxu0
  %v412 = vadd.f32 0.0, %v411
  %413 = vmatmul.f32.gmra.mxu0 %v202
  %v414 = vpop.f32.mrf.mxu0
  %v415 = vadd.f32 0.0, %v414
  %416 = vmatmul.f32.gmra.mxu0 %v205
  %v417 = vpop.f32.mrf.mxu0
  %v418 = vadd.f32 0.0, %v417
  %419 = vmatmul.f32.gmra.mxu0 %v208
  %v420 = vpop.f32.mrf.mxu0
  %v421 = vadd.f32 0.0, %v420
  %422 = vmatmul.f32.gmra.mxu0 %v211
  %v423 = vpop.f32.mrf.mxu0
  %v424 = vadd.f32 0.0, %v423
  %425 = vmatmul.f32.gmra.mxu0 %v214
  %v426 = vpop.f32.mrf.mxu0
  %v427 = vadd.f32 0.0, %v426
  %428 = vmatmul.f32.gmra.mxu0 %v217
  %v429 = vpop.f32.mrf.mxu0
  %v430 = vadd.f32 0.0, %v429
  %431 = vmatmul.f32.gmra.mxu0 %v220
  %v432 = vpop.f32.mrf.mxu0
  %v433 = vadd.f32 0.0, %v432
  %434 = vmatmul.f32.gmra.mxu0 %v223
  %v435 = vpop.f32.mrf.mxu0
  %v436 = vadd.f32 0.0, %v435
  %437 = vmatmul.f32.gmra.mxu0 %v226
  %v438 = vpop.f32.mrf.mxu0
  %v439 = vadd.f32 0.0, %v438
  %440 = vmatmul.f32.gmra.mxu0 %v229
  %v441 = vpop.f32.mrf.mxu0
  %v442 = vadd.f32 0.0, %v441
  %443 = vmatmul.f32.gmra.mxu0 %v232
  %v444 = vpop.f32.mrf.mxu0
  %v445 = vadd.f32 0.0, %v444
  %446 = vmatmul.f32.gmra.mxu0 %v235
  %v447 = vpop.f32.mrf.mxu0
  %v448 = vadd.f32 0.0, %v447
  %449 = vmatmul.f32.gmra.mxu0 %v238
  %v450 = vpop.f32.mrf.mxu0
  %v451 = vadd.f32 0.0, %v450
  %452 = vmatmul.f32.gmra.mxu0 %v241
  %v453 = vpop.f32.mrf.mxu0
  %v454 = vadd.f32 0.0, %v453
  %455 = vmatmul.f32.gmra.mxu0 %v244
  %v456 = vpop.f32.mrf.mxu0
  %v457 = vadd.f32 0.0, %v456
  %458 = vmatmul.f32.gmra.mxu0 %v247
  %v459 = vpop.f32.mrf.mxu0
  %v460 = vadd.f32 0.0, %v459
  %461 = vmatmul.f32.gmra.mxu0 %v250
  %v462 = vpop.f32.mrf.mxu0
  %v463 = vadd.f32 0.0, %v462
  %464 = vmatmul.f32.gmra.mxu0 %v253
  %v465 = vpop.f32.mrf.mxu0
  %v466 = vadd.f32 0.0, %v465
  %467 = vmatmul.f32.gmra.mxu0 %v256
  %v468 = vpop.f32.mrf.mxu0
  %v469 = vadd.f32 0.0, %v468
  %470 = vmatmul.f32.gmra.mxu0 %v259
  %v471 = vpop.f32.mrf.mxu0
  %v472 = vadd.f32 0.0, %v471
  %473 = vmatmul.f32.gmra.mxu0 %v262
  %v474 = vpop.f32.mrf.mxu0
  %v475 = vadd.f32 0.0, %v474
  %476 = vmatmul.f32.gmra.mxu0 %v265
  %v477 = vpop.f32.mrf.mxu0
  %v478 = vadd.f32 0.0, %v477
  %479 = vmatmul.f32.gmra.mxu0 %v268
  %v480 = vpop.f32.mrf.mxu0
  %v481 = vadd.f32 0.0, %v480
  %482 = vmatmul.f32.gmra.mxu0 %v271
  %v483 = vpop.f32.mrf.mxu0
  %v484 = vadd.f32 0.0, %v483
  %485 = vmatmul.f32.gmra.mxu0 %v274
  %v486 = vpop.f32.mrf.mxu0
  %v487 = vadd.f32 0.0, %v486
  %488 = vmatmul.f32.gmra.mxu0 %v277
  %v489 = vpop.f32.mrf.mxu0
  %v490 = vadd.f32 0.0, %v489
  %491 = vdwg.mxu0
  %v492 = vld [vmem:[%s2] sm:$0x1]
  %v494 = vperm.slane %v492, 0
  %v496 = vmul.f32 %v301, %v494
  %v497 = vmul.f32 %v304, %v494
  %v498 = vmul.f32 %v307, %v494
  %v499 = vmul.f32 %v310, %v494
  %v500 = vmul.f32 %v313, %v494
  %v501 = vmul.f32 %v316, %v494
  %v502 = vmul.f32 %v319, %v494
  %v503 = vmul.f32 %v322, %v494
  %v504 = vmul.f32 %v325, %v494
  %v505 = vmul.f32 %v328, %v494
  %v506 = vmul.f32 %v331, %v494
  %v507 = vmul.f32 %v334, %v494
  %v508 = vmul.f32 %v337, %v494
  %v509 = vmul.f32 %v340, %v494
  %v510 = vmul.f32 %v343, %v494
  %v511 = vmul.f32 %v346, %v494
  %v512 = vmul.f32 %v349, %v494
  %v513 = vmul.f32 %v352, %v494
  %v514 = vmul.f32 %v355, %v494
  %v515 = vmul.f32 %v358, %v494
  %v516 = vmul.f32 %v361, %v494
  %v517 = vmul.f32 %v364, %v494
  %v518 = vmul.f32 %v367, %v494
  %v519 = vmul.f32 %v370, %v494
  %v520 = vmul.f32 %v373, %v494
  %v521 = vmul.f32 %v376, %v494
  %v522 = vmul.f32 %v379, %v494
  %v523 = vmul.f32 %v382, %v494
  %v524 = vmul.f32 %v385, %v494
  %v525 = vmul.f32 %v388, %v494
  %v526 = vmul.f32 %v391, %v494
  %v527 = vmul.f32 %v394, %v494
  %v528 = vmul.f32 %v397, %v494
  %v529 = vmul.f32 %v400, %v494
  %v530 = vmul.f32 %v403, %v494
  %v531 = vmul.f32 %v406, %v494
  %v532 = vmul.f32 %v409, %v494
  %v533 = vmul.f32 %v412, %v494
  %v534 = vmul.f32 %v415, %v494
  %v535 = vmul.f32 %v418, %v494
  %v536 = vmul.f32 %v421, %v494
  %v537 = vmul.f32 %v424, %v494
  %v538 = vmul.f32 %v427, %v494
  %v539 = vmul.f32 %v430, %v494
  %v540 = vmul.f32 %v433, %v494
  %v541 = vmul.f32 %v436, %v494
  %v542 = vmul.f32 %v439, %v494
  %v543 = vmul.f32 %v442, %v494
  %v544 = vmul.f32 %v445, %v494
  %v545 = vmul.f32 %v448, %v494
  %v546 = vmul.f32 %v451, %v494
  %v547 = vmul.f32 %v454, %v494
  %v548 = vmul.f32 %v457, %v494
  %v549 = vmul.f32 %v460, %v494
  %v550 = vmul.f32 %v463, %v494
  %v551 = vmul.f32 %v466, %v494
  %v552 = vmul.f32 %v469, %v494
  %v553 = vmul.f32 %v472, %v494
  %v554 = vmul.f32 %v475, %v494
  %v555 = vmul.f32 %v478, %v494
  %v556 = vmul.f32 %v481, %v494
  %v557 = vmul.f32 %v484, %v494
  %v558 = vmul.f32 %v487, %v494
  %v559 = vmul.f32 %v490, %v494
  %v560 = vld [vmem:[%s3] sm:$0x1]
  %v562 = vperm.slane %v560, 0
  %v564 = vadd.f32 %v496, %v562
  %v565 = vadd.f32 %v497, %v562
  %v566 = vadd.f32 %v498, %v562
  %v567 = vadd.f32 %v499, %v562
  %v568 = vadd.f32 %v500, %v562
  %v569 = vadd.f32 %v501, %v562
  %v570 = vadd.f32 %v502, %v562
  %v571 = vadd.f32 %v503, %v562
  %v572 = vadd.f32 %v504, %v562
  %v573 = vadd.f32 %v505, %v562
  %v574 = vadd.f32 %v506, %v562
  %v575 = vadd.f32 %v507, %v562
  %v576 = vadd.f32 %v508, %v562
  %v577 = vadd.f32 %v509, %v562
  %v578 = vadd.f32 %v510, %v562
  %v579 = vadd.f32 %v511, %v562
  %v580 = vadd.f32 %v512, %v562
  %v581 = vadd.f32 %v513, %v562
  %v582 = vadd.f32 %v514, %v562
  %v583 = vadd.f32 %v515, %v562
  %v584 = vadd.f32 %v516, %v562
  %v585 = vadd.f32 %v517, %v562
  %v586 = vadd.f32 %v518, %v562
  %v587 = vadd.f32 %v519, %v562
  %v588 = vadd.f32 %v520, %v562
  %v589 = vadd.f32 %v521, %v562
  %v590 = vadd.f32 %v522, %v562
  %v591 = vadd.f32 %v523, %v562
  %v592 = vadd.f32 %v524, %v562
  %v593 = vadd.f32 %v525, %v562
  %v594 = vadd.f32 %v526, %v562
  %v595 = vadd.f32 %v527, %v562
  %v596 = vadd.f32 %v528, %v562
  %v597 = vadd.f32 %v529, %v562
  %v598 = vadd.f32 %v530, %v562
  %v599 = vadd.f32 %v531, %v562
  %v600 = vadd.f32 %v532, %v562
  %v601 = vadd.f32 %v533, %v562
  %v602 = vadd.f32 %v534, %v562
  %v603 = vadd.f32 %v535, %v562
  %v604 = vadd.f32 %v536, %v562
  %v605 = vadd.f32 %v537, %v562
  %v606 = vadd.f32 %v538, %v562
  %v607 = vadd.f32 %v539, %v562
  %v608 = vadd.f32 %v540, %v562
  %v609 = vadd.f32 %v541, %v562
  %v610 = vadd.f32 %v542, %v562
  %v611 = vadd.f32 %v543, %v562
  %v612 = vadd.f32 %v544, %v562
  %v613 = vadd.f32 %v545, %v562
  %v614 = vadd.f32 %v546, %v562
  %v615 = vadd.f32 %v547, %v562
  %v616 = vadd.f32 %v548, %v562
  %v617 = vadd.f32 %v549, %v562
  %v618 = vadd.f32 %v550, %v562
  %v619 = vadd.f32 %v551, %v562
  %v620 = vadd.f32 %v552, %v562
  %v621 = vadd.f32 %v553, %v562
  %v622 = vadd.f32 %v554, %v562
  %v623 = vadd.f32 %v555, %v562
  %v624 = vadd.f32 %v556, %v562
  %v625 = vadd.f32 %v557, %v562
  %v626 = vadd.f32 %v558, %v562
  %v627 = vadd.f32 %v559, %v562
  %vm628 = vcmp.ge.f32.partialorder %v564, 0.0
  %vm629 = vcmp.ge.f32.partialorder %v565, 0.0
  %vm630 = vcmp.ge.f32.partialorder %v566, 0.0
  %vm631 = vcmp.ge.f32.partialorder %v567, 0.0
  %vm632 = vcmp.ge.f32.partialorder %v568, 0.0
  %vm633 = vcmp.ge.f32.partialorder %v569, 0.0
  %vm634 = vcmp.ge.f32.partialorder %v570, 0.0
  %vm635 = vcmp.ge.f32.partialorder %v571, 0.0
  %vm636 = vcmp.ge.f32.partialorder %v572, 0.0
  %vm637 = vcmp.ge.f32.partialorder %v573, 0.0
  %vm638 = vcmp.ge.f32.partialorder %v574, 0.0
  %vm639 = vcmp.ge.f32.partialorder %v575, 0.0
  %vm640 = vcmp.ge.f32.partialorder %v576, 0.0
  %vm641 = vcmp.ge.f32.partialorder %v577, 0.0
  %vm642 = vcmp.ge.f32.partialorder %v578, 0.0
  %vm643 = vcmp.ge.f32.partialorder %v579, 0.0
  %vm644 = vcmp.ge.f32.partialorder %v580, 0.0
  %vm645 = vcmp.ge.f32.partialorder %v581, 0.0
  %vm646 = vcmp.ge.f32.partialorder %v582, 0.0
  %vm647 = vcmp.ge.f32.partialorder %v583, 0.0
  %vm648 = vcmp.ge.f32.partialorder %v584, 0.0
  %vm649 = vcmp.ge.f32.partialorder %v585, 0.0
  %vm650 = vcmp.ge.f32.partialorder %v586, 0.0
  %vm651 = vcmp.ge.f32.partialorder %v587, 0.0
  %vm652 = vcmp.ge.f32.partialorder %v588, 0.0
  %vm653 = vcmp.ge.f32.partialorder %v589, 0.0
  %vm654 = vcmp.ge.f32.partialorder %v590, 0.0
  %vm655 = vcmp.ge.f32.partialorder %v591, 0.0
  %vm656 = vcmp.ge.f32.partialorder %v592, 0.0
  %vm657 = vcmp.ge.f32.partialorder %v593, 0.0
  %vm658 = vcmp.ge.f32.partialorder %v594, 0.0
  %vm659 = vcmp.ge.f32.partialorder %v595, 0.0
  %vm660 = vcmp.ge.f32.partialorder %v596, 0.0
  %vm661 = vcmp.ge.f32.partialorder %v597, 0.0
  %vm662 = vcmp.ge.f32.partialorder %v598, 0.0
  %vm663 = vcmp.ge.f32.partialorder %v599, 0.0
  %vm664 = vcmp.ge.f32.partialorder %v600, 0.0
  %vm665 = vcmp.ge.f32.partialorder %v601, 0.0
  %vm666 = vcmp.ge.f32.partialorder %v602, 0.0
  %vm667 = vcmp.ge.f32.partialorder %v603, 0.0
  %vm668 = vcmp.ge.f32.partialorder %v604, 0.0
  %vm669 = vcmp.ge.f32.partialorder %v605, 0.0
  %vm670 = vcmp.ge.f32.partialorder %v606, 0.0
  %vm671 = vcmp.ge.f32.partialorder %v607, 0.0
  %vm672 = vcmp.ge.f32.partialorder %v608, 0.0
  %vm673 = vcmp.ge.f32.partialorder %v609, 0.0
  %vm674 = vcmp.ge.f32.partialorder %v610, 0.0
  %vm675 = vcmp.ge.f32.partialorder %v611, 0.0
  %vm676 = vcmp.ge.f32.partialorder %v612, 0.0
  %vm677 = vcmp.ge.f32.partialorder %v613, 0.0
  %vm678 = vcmp.ge.f32.partialorder %v614, 0.0
  %vm679 = vcmp.ge.f32.partialorder %v615, 0.0
  %vm680 = vcmp.ge.f32.partialorder %v616, 0.0
  %vm681 = vcmp.ge.f32.partialorder %v617, 0.0
  %vm682 = vcmp.ge.f32.partialorder %v618, 0.0
  %vm683 = vcmp.ge.f32.partialorder %v619, 0.0
  %vm684 = vcmp.ge.f32.partialorder %v620, 0.0
  %vm685 = vcmp.ge.f32.partialorder %v621, 0.0
  %vm686 = vcmp.ge.f32.partialorder %v622, 0.0
  %vm687 = vcmp.ge.f32.partialorder %v623, 0.0
  %vm688 = vcmp.ge.f32.partialorder %v624, 0.0
  %vm689 = vcmp.ge.f32.partialorder %v625, 0.0
  %vm690 = vcmp.ge.f32.partialorder %v626, 0.0
  %vm691 = vcmp.ge.f32.partialorder %v627, 0.0
  %v692 = vmul.f32 %v564, 0.01
  %v693 = vmul.f32 %v565, 0.01
  %v694 = vmul.f32 %v566, 0.01
  %v695 = vmul.f32 %v567, 0.01
  %v696 = vmul.f32 %v568, 0.01
  %v697 = vmul.f32 %v569, 0.01
  %v698 = vmul.f32 %v570, 0.01
  %v699 = vmul.f32 %v571, 0.01
  %v700 = vmul.f32 %v572, 0.01
  %v701 = vmul.f32 %v573, 0.01
  %v702 = vmul.f32 %v574, 0.01
  %v703 = vmul.f32 %v575, 0.01
  %v704 = vmul.f32 %v576, 0.01
  %v705 = vmul.f32 %v577, 0.01
  %v706 = vmul.f32 %v578, 0.01
  %v707 = vmul.f32 %v579, 0.01
  %v708 = vmul.f32 %v580, 0.01
  %v709 = vmul.f32 %v581, 0.01
  %v710 = vmul.f32 %v582, 0.01
  %v711 = vmul.f32 %v583, 0.01
  %v712 = vmul.f32 %v584, 0.01
  %v713 = vmul.f32 %v585, 0.01
  %v714 = vmul.f32 %v586, 0.01
  %v715 = vmul.f32 %v587, 0.01
  %v716 = vmul.f32 %v588, 0.01
  %v717 = vmul.f32 %v589, 0.01
  %v718 = vmul.f32 %v590, 0.01
  %v719 = vmul.f32 %v591, 0.01
  %v720 = vmul.f32 %v592, 0.01
  %v721 = vmul.f32 %v593, 0.01
  %v722 = vmul.f32 %v594, 0.01
  %v723 = vmul.f32 %v595, 0.01
  %v724 = vmul.f32 %v596, 0.01
  %v725 = vmul.f32 %v597, 0.01
  %v726 = vmul.f32 %v598, 0.01
  %v727 = vmul.f32 %v599, 0.01
  %v728 = vmul.f32 %v600, 0.01
  %v729 = vmul.f32 %v601, 0.01
  %v730 = vmul.f32 %v602, 0.01
  %v731 = vmul.f32 %v603, 0.01
  %v732 = vmul.f32 %v604, 0.01
  %v733 = vmul.f32 %v605, 0.01
  %v734 = vmul.f32 %v606, 0.01
  %v735 = vmul.f32 %v607, 0.01
  %v736 = vmul.f32 %v608, 0.01
  %v737 = vmul.f32 %v609, 0.01
  %v738 = vmul.f32 %v610, 0.01
  %v739 = vmul.f32 %v611, 0.01
  %v740 = vmul.f32 %v612, 0.01
  %v741 = vmul.f32 %v613, 0.01
  %v742 = vmul.f32 %v614, 0.01
  %v743 = vmul.f32 %v615, 0.01
  %v744 = vmul.f32 %v616, 0.01
  %v745 = vmul.f32 %v617, 0.01
  %v746 = vmul.f32 %v618, 0.01
  %v747 = vmul.f32 %v619, 0.01
  %v748 = vmul.f32 %v620, 0.01
  %v749 = vmul.f32 %v621, 0.01
  %v750 = vmul.f32 %v622, 0.01
  %v751 = vmul.f32 %v623, 0.01
  %v752 = vmul.f32 %v624, 0.01
  %v753 = vmul.f32 %v625, 0.01
  %v754 = vmul.f32 %v626, 0.01
  %v755 = vmul.f32 %v627, 0.01
  %v756 = vsel %vm628, %v564, %v692
  %v757 = vsel %vm629, %v565, %v693
  %v758 = vsel %vm630, %v566, %v694
  %v759 = vsel %vm631, %v567, %v695
  %v760 = vsel %vm632, %v568, %v696
  %v761 = vsel %vm633, %v569, %v697
  %v762 = vsel %vm634, %v570, %v698
  %v763 = vsel %vm635, %v571, %v699
  %v764 = vsel %vm636, %v572, %v700
  %v765 = vsel %vm637, %v573, %v701
  %v766 = vsel %vm638, %v574, %v702
  %v767 = vsel %vm639, %v575, %v703
  %v768 = vsel %vm640, %v576, %v704
  %v769 = vsel %vm641, %v577, %v705
  %v770 = vsel %vm642, %v578, %v706
  %v771 = vsel %vm643, %v579, %v707
  %v772 = vsel %vm644, %v580, %v708
  %v773 = vsel %vm645, %v581, %v709
  %v774 = vsel %vm646, %v582, %v710
  %v775 = vsel %vm647, %v583, %v711
  %v776 = vsel %vm648, %v584, %v712
  %v777 = vsel %vm649, %v585, %v713
  %v778 = vsel %vm650, %v586, %v714
  %v779 = vsel %vm651, %v587, %v715
  %v780 = vsel %vm652, %v588, %v716
  %v781 = vsel %vm653, %v589, %v717
  %v782 = vsel %vm654, %v590, %v718
  %v783 = vsel %vm655, %v591, %v719
  %v784 = vsel %vm656, %v592, %v720
  %v785 = vsel %vm657, %v593, %v721
  %v786 = vsel %vm658, %v594, %v722
  %v787 = vsel %vm659, %v595, %v723
  %v788 = vsel %vm660, %v596, %v724
  %v789 = vsel %vm661, %v597, %v725
  %v790 = vsel %vm662, %v598, %v726
  %v791 = vsel %vm663, %v599, %v727
  %v792 = vsel %vm664, %v600, %v728
  %v793 = vsel %vm665, %v601, %v729
  %v794 = vsel %vm666, %v602, %v730
  %v795 = vsel %vm667, %v603, %v731
  %v796 = vsel %vm668, %v604, %v732
  %v797 = vsel %vm669, %v605, %v733
  %v798 = vsel %vm670, %v606, %v734
  %v799 = vsel %vm671, %v607, %v735
  %v800 = vsel %vm672, %v608, %v736
  %v801 = vsel %vm673, %v609, %v737
  %v802 = vsel %vm674, %v610, %v738
  %v803 = vsel %vm675, %v611, %v739
  %v804 = vsel %vm676, %v612, %v740
  %v805 = vsel %vm677, %v613, %v741
  %v806 = vsel %vm678, %v614, %v742
  %v807 = vsel %vm679, %v615, %v743
  %v808 = vsel %vm680, %v616, %v744
  %v809 = vsel %vm681, %v617, %v745
  %v810 = vsel %vm682, %v618, %v746
  %v811 = vsel %vm683, %v619, %v747
  %v812 = vsel %vm684, %v620, %v748
  %v813 = vsel %vm685, %v621, %v749
  %v814 = vsel %vm686, %v622, %v750
  %v815 = vsel %vm687, %v623, %v751
  %v816 = vsel %vm688, %v624, %v752
  %v817 = vsel %vm689, %v625, %v753
  %v818 = vsel %vm690, %v626, %v754
  %v819 = vsel %vm691, %v627, %v755
  %vm820 = vcmask 130048
  %821 = vst.msk [vmem:[%s4] sm:$0xff] %vm820, %v756
  %822 = vst.msk [vmem:[%s4 + $0x8] sm:$0xff] %vm820, %v757
  %823 = vst.msk [vmem:[%s4 + $0x10] sm:$0xff] %vm820, %v758
  %824 = vst.msk [vmem:[%s4 + $0x18] sm:$0xff] %vm820, %v759
  %825 = vst.msk [vmem:[%s4 + $0x20] sm:$0xff] %vm820, %v760
  %826 = vst.msk [vmem:[%s4 + $0x28] sm:$0xff] %vm820, %v761
  %827 = vst.msk [vmem:[%s4 + $0x30] sm:$0xff] %vm820, %v762
  %828 = vst.msk [vmem:[%s4 + $0x38] sm:$0xff] %vm820, %v763
  %829 = vst.msk [vmem:[%s4 + $0x40] sm:$0xff] %vm820, %v764
  %830 = vst.msk [vmem:[%s4 + $0x48] sm:$0xff] %vm820, %v765
  %831 = vst.msk [vmem:[%s4 + $0x50] sm:$0xff] %vm820, %v766
  %832 = vst.msk [vmem:[%s4 + $0x58] sm:$0xff] %vm820, %v767
  %833 = vst.msk [vmem:[%s4 + $0x60] sm:$0xff] %vm820, %v768
  %834 = vst.msk [vmem:[%s4 + $0x68] sm:$0xff] %vm820, %v769
  %835 = vst.msk [vmem:[%s4 + $0x70] sm:$0xff] %vm820, %v770
  %836 = vst.msk [vmem:[%s4 + $0x78] sm:$0xff] %vm820, %v771
  %837 = vst.msk [vmem:[%s4 + $0x80] sm:$0xff] %vm820, %v772
  %838 = vst.msk [vmem:[%s4 + $0x88] sm:$0xff] %vm820, %v773
  %839 = vst.msk [vmem:[%s4 + $0x90] sm:$0xff] %vm820, %v774
  %840 = vst.msk [vmem:[%s4 + $0x98] sm:$0xff] %vm820, %v775
  %841 = vst.msk [vmem:[%s4 + $0xa0] sm:$0xff] %vm820, %v776
  %842 = vst.msk [vmem:[%s4 + $0xa8] sm:$0xff] %vm820, %v777
  %843 = vst.msk [vmem:[%s4 + $0xb0] sm:$0xff] %vm820, %v778
  %844 = vst.msk [vmem:[%s4 + $0xb8] sm:$0xff] %vm820, %v779
  %845 = vst.msk [vmem:[%s4 + $0xc0] sm:$0xff] %vm820, %v780
  %846 = vst.msk [vmem:[%s4 + $0xc8] sm:$0xff] %vm820, %v781
  %847 = vst.msk [vmem:[%s4 + $0xd0] sm:$0xff] %vm820, %v782
  %848 = vst.msk [vmem:[%s4 + $0xd8] sm:$0xff] %vm820, %v783
  %849 = vst.msk [vmem:[%s4 + $0xe0] sm:$0xff] %vm820, %v784
  %850 = vst.msk [vmem:[%s4 + $0xe8] sm:$0xff] %vm820, %v785
  %851 = vst.msk [vmem:[%s4 + $0xf0] sm:$0xff] %vm820, %v786
  %852 = vst.msk [vmem:[%s4 + $0xf8] sm:$0xff] %vm820, %v787
  %853 = vst.msk [vmem:[%s4 + $0x100] sm:$0xff] %vm820, %v788
  %854 = vst.msk [vmem:[%s4 + $0x108] sm:$0xff] %vm820, %v789
  %855 = vst.msk [vmem:[%s4 + $0x110] sm:$0xff] %vm820, %v790
  %856 = vst.msk [vmem:[%s4 + $0x118] sm:$0xff] %vm820, %v791
  %857 = vst.msk [vmem:[%s4 + $0x120] sm:$0xff] %vm820, %v792
  %858 = vst.msk [vmem:[%s4 + $0x128] sm:$0xff] %vm820, %v793
  %859 = vst.msk [vmem:[%s4 + $0x130] sm:$0xff] %vm820, %v794
  %860 = vst.msk [vmem:[%s4 + $0x138] sm:$0xff] %vm820, %v795
  %861 = vst.msk [vmem:[%s4 + $0x140] sm:$0xff] %vm820, %v796
  %862 = vst.msk [vmem:[%s4 + $0x148] sm:$0xff] %vm820, %v797
  %863 = vst.msk [vmem:[%s4 + $0x150] sm:$0xff] %vm820, %v798
  %864 = vst.msk [vmem:[%s4 + $0x158] sm:$0xff] %vm820, %v799
  %865 = vst.msk [vmem:[%s4 + $0x160] sm:$0xff] %vm820, %v800
  %866 = vst.msk [vmem:[%s4 + $0x168] sm:$0xff] %vm820, %v801
  %867 = vst.msk [vmem:[%s4 + $0x170] sm:$0xff] %vm820, %v802
  %868 = vst.msk [vmem:[%s4 + $0x178] sm:$0xff] %vm820, %v803
  %869 = vst.msk [vmem:[%s4 + $0x180] sm:$0xff] %vm820, %v804
  %870 = vst.msk [vmem:[%s4 + $0x188] sm:$0xff] %vm820, %v805
  %871 = vst.msk [vmem:[%s4 + $0x190] sm:$0xff] %vm820, %v806
  %872 = vst.msk [vmem:[%s4 + $0x198] sm:$0xff] %vm820, %v807
  %873 = vst.msk [vmem:[%s4 + $0x1a0] sm:$0xff] %vm820, %v808
  %874 = vst.msk [vmem:[%s4 + $0x1a8] sm:$0xff] %vm820, %v809
  %875 = vst.msk [vmem:[%s4 + $0x1b0] sm:$0xff] %vm820, %v810
  %876 = vst.msk [vmem:[%s4 + $0x1b8] sm:$0xff] %vm820, %v811
  %877 = vst.msk [vmem:[%s4 + $0x1c0] sm:$0xff] %vm820, %v812
  %878 = vst.msk [vmem:[%s4 + $0x1c8] sm:$0xff] %vm820, %v813
  %879 = vst.msk [vmem:[%s4 + $0x1d0] sm:$0xff] %vm820, %v814
  %880 = vst.msk [vmem:[%s4 + $0x1d8] sm:$0xff] %vm820, %v815
  %881 = vst.msk [vmem:[%s4 + $0x1e0] sm:$0xff] %vm820, %v816
  %882 = vst.msk [vmem:[%s4 + $0x1e8] sm:$0xff] %vm820, %v817
  %883 = vst.msk [vmem:[%s4 + $0x1f0] sm:$0xff] %vm820, %v818
  %884 = vst.msk [vmem:[%s4 + $0x1f8] sm:$0xff] %vm820, %v819
  // Predicated region
  $region18: #{_lambda_.8} parent=0 // pred_check
    _
  $region19: #{_lambda_.8} parent=0 // pred_check_branch
    %886 = sbr.rel (0) target = $region21
  $region20: #{_lambda_.8} parent=0 // pred_region
    _
  $region21: #{_lambda_.8} parent=0 // pred_fallthru
    _
  // Predicated region
  $region22: #{_lambda_.8} parent=0 // pred_check
    _
  $region23: #{_lambda_.8} parent=0 // pred_check_branch
    %888 = sbr.rel (0) target = $region25
  $region24: #{_lambda_.8} parent=0 // pred_region
    _
  $region25: #{_lambda_.8} parent=0 // pred_fallthru
    _

// kernel: _lambda_.10
$region0: #{_lambda_.10}
  #allocation0 [shape = 'u32[]', space=smem, size = 0x4, offset = 0x4, fixed_abs, tag = 'smem constant byte address 0x4 - core index']
  #allocation1 [shape = 'u32[72,128]{1,0:T(1,128)}', space=vmem, size = 0x9000, scoped, tag = 'internal scratch']
  %s0 = inlined_call_operand.vmem [shape: f32[128,16], index: 0, kind: input, shape index: {}]
  %s1 = inlined_call_operand.vmem [shape: f32[16,8], index: 1, kind: input, shape index: {}]
  %s2 = inlined_call_operand.vmem [shape: f32[1,8], index: 2, kind: input, shape index: {}]
  %s3 = inlined_call_operand.vmem [shape: f32[1,8], index: 3, kind: input, shape index: {}]
  %s4 = inlined_call_operand.vmem [shape: f32[128,8], index: 4, kind: output, shape index: {}]
  %s5 = sld [smem:[#allocation0]]
  $region26: #{_lambda_.10} parent=0
    _
  %s7 = ssub.s32 1, %s5
  %s8 = scalar_select 0, %s7, %s5
  // Predicated region
  $region2: #{_lambda_.10} parent=0 // pred_check
    _
  $region3: #{_lambda_.10} parent=0 // pred_check_branch
    %10 = sbr.rel (0) target = $region5
  $region4: #{_lambda_.10} parent=0 // pred_region
    _
  $region5: #{_lambda_.10} parent=0 // pred_fallthru
    _
  // Predicated region
  $region6: #{_lambda_.10} parent=0 // pred_check
    _
  $region7: #{_lambda_.10} parent=0 // pred_check_branch
    %12 = sbr.rel (0) target = $region9
  $region8: #{_lambda_.10} parent=0 // pred_region
    _
  $region9: #{_lambda_.10} parent=0 // pred_fallthru
    _
  // Predicated region
  $region10: #{_lambda_.10} parent=0 // pred_check
    _
  $region11: #{_lambda_.10} parent=0 // pred_check_branch
    %14 = sbr.rel (0) target = $region13
  $region12: #{_lambda_.10} parent=0 // pred_region
    _
  $region13: #{_lambda_.10} parent=0 // pred_fallthru
    _
  // Predicated region
  $region14: #{_lambda_.10} parent=0 // pred_check
    _
  $region15: #{_lambda_.10} parent=0 // pred_check_branch
    %16 = sbr.rel (0) target = $region17
  $region16: #{_lambda_.10} parent=0 // pred_region
    _
  $region17: #{_lambda_.10} parent=0 // pred_fallthru
    _
  %v17 = vld [vmem:[%s0] sm:$0xff]
  %v18 = vld [vmem:[%s0 + $0x8] sm:$0xff]
  %v19 = vld [vmem:[%s0 + $0x10] sm:$0xff]
  %v20 = vld [vmem:[%s0 + $0x18] sm:$0xff]
  %v21 = vld [vmem:[%s0 + $0x20] sm:$0xff]
  %v22 = vld [vmem:[%s0 + $0x28] sm:$0xff]
  %v23 = vld [vmem:[%s0 + $0x30] sm:$0xff]
  %v24 = vld [vmem:[%s0 + $0x38] sm:$0xff]
  %v25 = vld [vmem:[%s0 + $0x40] sm:$0xff]
  %v26 = vld [vmem:[%s0 + $0x48] sm:$0xff]
  %v27 = vld [vmem:[%s0 + $0x50] sm:$0xff]
  %v28 = vld [vmem:[%s0 + $0x58] sm:$0xff]
  %v29 = vld [vmem:[%s0 + $0x60] sm:$0xff]
  %v30 = vld [vmem:[%s0 + $0x68] sm:$0xff]
  %v31 = vld [vmem:[%s0 + $0x70] sm:$0xff]
  %v32 = vld [vmem:[%s0 + $0x78] sm:$0xff]
  %v33 = vld [vmem:[%s1] sm:$0xff]
  %v34 = vld [vmem:[%s1 + $0x8] sm:$0xff]
  %vm35 = vcmask 130048
  %v37 = vsel %vm35, %v17, 0
  %v40 = vsel %vm35, %v18, 0
  %v43 = vsel %vm35, %v19, 0
  %v46 = vsel %vm35, %v20, 0
  %v49 = vsel %vm35, %v21, 0
  %v52 = vsel %vm35, %v22, 0
  %v55 = vsel %vm35, %v23, 0
  %v58 = vsel %vm35, %v24, 0
  %v61 = vsel %vm35, %v25, 0
  %v64 = vsel %vm35, %v26, 0
  %v67 = vsel %vm35, %v27, 0
  %v70 = vsel %vm35, %v28, 0
  %v73 = vsel %vm35, %v29, 0
  %v76 = vsel %vm35, %v30, 0
  %v79 = vsel %vm35, %v31, 0
  %v82 = vsel %vm35, %v32, 0
  %84 = vmatpush.msra.mxu0 0.0
  %85 = vmatpush.msra.mxu0 0.0
  %86 = vmatpush.msra.mxu0 0.0
  %87 = vmatpush.msra.mxu0 0.0
  %88 = vmatpush.msra.mxu0 0.0
  %89 = vmatpush.msra.mxu0 0.0
  %90 = vmatpush.msra.mxu0 0.0
  %91 = vmatpush.msra.mxu0 0.0
  %92 = vmatpush.msra.mxu0 0.0
  %93 = vmatpush.msra.mxu0 0.0
  %94 = vmatpush.msra.mxu0 0.0
  %95 = vmatpush.msra.mxu0 0.0
  %96 = vmatpush.msra.mxu0 0.0
  %97 = vmatpush.msra.mxu0 0.0
  %98 = vmatpush.msra.mxu0 %v34
  %99 = vmatpush.msra.mxu0 %v33
  %100 = vmatmul.f32.gmra.mxu0 %v37
  %v101 = vpop.f32.mrf.mxu0
  %v102 = vadd.f32 0.0, %v101
  %103 = vmatmul.f32.gmra.mxu0 %v40
  %v104 = vpop.f32.mrf.mxu0
  %v105 = vadd.f32 0.0, %v104
  %106 = vmatmul.f32.gmra.mxu0 %v43
  %v107 = vpop.f32.mrf.mxu0
  %v108 = vadd.f32 0.0, %v107
  %109 = vmatmul.f32.gmra.mxu0 %v46
  %v110 = vpop.f32.mrf.mxu0
  %v111 = vadd.f32 0.0, %v110
  %112 = vmatmul.f32.gmra.mxu0 %v49
  %v113 = vpop.f32.mrf.mxu0
  %v114 = vadd.f32 0.0, %v113
  %115 = vmatmul.f32.gmra.mxu0 %v52
  %v116 = vpop.f32.mrf.mxu0
  %v117 = vadd.f32 0.0, %v116
  %118 = vmatmul.f32.gmra.mxu0 %v55
  %v119 = vpop.f32.mrf.mxu0
  %v120 = vadd.f32 0.0, %v119
  %121 = vmatmul.f32.gmra.mxu0 %v58
  %v122 = vpop.f32.mrf.mxu0
  %v123 = vadd.f32 0.0, %v122
  %124 = vmatmul.f32.gmra.mxu0 %v61
  %v125 = vpop.f32.mrf.mxu0
  %v126 = vadd.f32 0.0, %v125
  %127 = vmatmul.f32.gmra.mxu0 %v64
  %v128 = vpop.f32.mrf.mxu0
  %v129 = vadd.f32 0.0, %v128
  %130 = vmatmul.f32.gmra.mxu0 %v67
  %v131 = vpop.f32.mrf.mxu0
  %v132 = vadd.f32 0.0, %v131
  %133 = vmatmul.f32.gmra.mxu0 %v70
  %v134 = vpop.f32.mrf.mxu0
  %v135 = vadd.f32 0.0, %v134
  %136 = vmatmul.f32.gmra.mxu0 %v73
  %v137 = vpop.f32.mrf.mxu0
  %v138 = vadd.f32 0.0, %v137
  %139 = vmatmul.f32.gmra.mxu0 %v76
  %v140 = vpop.f32.mrf.mxu0
  %v141 = vadd.f32 0.0, %v140
  %142 = vmatmul.f32.gmra.mxu0 %v79
  %v143 = vpop.f32.mrf.mxu0
  %v144 = vadd.f32 0.0, %v143
  %145 = vmatmul.f32.gmra.mxu0 %v82
  %v146 = vpop.f32.mrf.mxu0
  %v147 = vadd.f32 0.0, %v146
  %148 = vdwg.mxu0
  %v149 = vld [vmem:[%s2] sm:$0x1]
  %v151 = vperm.slane %v149, 0
  %v153 = vmul.f32 %v102, %v151
  %v154 = vmul.f32 %v105, %v151
  %v155 = vmul.f32 %v108, %v151
  %v156 = vmul.f32 %v111, %v151
  %v157 = vmul.f32 %v114, %v151
  %v158 = vmul.f32 %v117, %v151
  %v159 = vmul.f32 %v120, %v151
  %v160 = vmul.f32 %v123, %v151
  %v161 = vmul.f32 %v126, %v151
  %v162 = vmul.f32 %v129, %v151
  %v163 = vmul.f32 %v132, %v151
  %v164 = vmul.f32 %v135, %v151
  %v165 = vmul.f32 %v138, %v151
  %v166 = vmul.f32 %v141, %v151
  %v167 = vmul.f32 %v144, %v151
  %v168 = vmul.f32 %v147, %v151
  %v169 = vld [vmem:[%s3] sm:$0x1]
  %v171 = vperm.slane %v169, 0
  %v173 = vadd.f32 %v153, %v171
  %v174 = vadd.f32 %v154, %v171
  %v175 = vadd.f32 %v155, %v171
  %v176 = vadd.f32 %v156, %v171
  %v177 = vadd.f32 %v157, %v171
  %v178 = vadd.f32 %v158, %v171
  %v179 = vadd.f32 %v159, %v171
  %v180 = vadd.f32 %v160, %v171
  %v181 = vadd.f32 %v161, %v171
  %v182 = vadd.f32 %v162, %v171
  %v183 = vadd.f32 %v163, %v171
  %v184 = vadd.f32 %v164, %v171
  %v185 = vadd.f32 %v165, %v171
  %v186 = vadd.f32 %v166, %v171
  %v187 = vadd.f32 %v167, %v171
  %v188 = vadd.f32 %v168, %v171
  %vm189 = vcmp.ge.f32.partialorder %v173, 0.0
  %vm190 = vcmp.ge.f32.partialorder %v174, 0.0
  %vm191 = vcmp.ge.f32.partialorder %v175, 0.0
  %vm192 = vcmp.ge.f32.partialorder %v176, 0.0
  %vm193 = vcmp.ge.f32.partialorder %v177, 0.0
  %vm194 = vcmp.ge.f32.partialorder %v178, 0.0
  %vm195 = vcmp.ge.f32.partialorder %v179, 0.0
  %vm196 = vcmp.ge.f32.partialorder %v180, 0.0
  %vm197 = vcmp.ge.f32.partialorder %v181, 0.0
  %vm198 = vcmp.ge.f32.partialorder %v182, 0.0
  %vm199 = vcmp.ge.f32.partialorder %v183, 0.0
  %vm200 = vcmp.ge.f32.partialorder %v184, 0.0
  %vm201 = vcmp.ge.f32.partialorder %v185, 0.0
  %vm202 = vcmp.ge.f32.partialorder %v186, 0.0
  %vm203 = vcmp.ge.f32.partialorder %v187, 0.0
  %vm204 = vcmp.ge.f32.partialorder %v188, 0.0
  %v205 = vmul.f32 %v173, 0.01
  %v206 = vmul.f32 %v174, 0.01
  %v207 = vmul.f32 %v175, 0.01
  %v208 = vmul.f32 %v176, 0.01
  %v209 = vmul.f32 %v177, 0.01
  %v210 = vmul.f32 %v178, 0.01
  %v211 = vmul.f32 %v179, 0.01
  %v212 = vmul.f32 %v180, 0.01
  %v213 = vmul.f32 %v181, 0.01
  %v214 = vmul.f32 %v182, 0.01
  %v215 = vmul.f32 %v183, 0.01
  %v216 = vmul.f32 %v184, 0.01
  %v217 = vmul.f32 %v185, 0.01
  %v218 = vmul.f32 %v186, 0.01
  %v219 = vmul.f32 %v187, 0.01
  %v220 = vmul.f32 %v188, 0.01
  %v221 = vsel %vm189, %v173, %v205
  %v222 = vsel %vm190, %v174, %v206
  %v223 = vsel %vm191, %v175, %v207
  %v224 = vsel %vm192, %v176, %v208
  %v225 = vsel %vm193, %v177, %v209
  %v226 = vsel %vm194, %v178, %v210
  %v227 = vsel %vm195, %v179, %v211
  %v228 = vsel %vm196, %v180, %v212
  %v229 = vsel %vm197, %v181, %v213
  %v230 = vsel %vm198, %v182, %v214
  %v231 = vsel %vm199, %v183, %v215
  %v232 = vsel %vm200, %v184, %v216
  %v233 = vsel %vm201, %v185, %v217
  %v234 = vsel %vm202, %v186, %v218
  %v235 = vsel %vm203, %v187, %v219
  %v236 = vsel %vm204, %v188, %v220
  %vm237 = vcmask 64512
  %238 = vst.msk [vmem:[%s4] sm:$0xff] %vm237, %v221
  %239 = vst.msk [vmem:[%s4 + $0x8] sm:$0xff] %vm237, %v222
  %240 = vst.msk [vmem:[%s4 + $0x10] sm:$0xff] %vm237, %v223
  %241 = vst.msk [vmem:[%s4 + $0x18] sm:$0xff] %vm237, %v224
  %242 = vst.msk [vmem:[%s4 + $0x20] sm:$0xff] %vm237, %v225
  %243 = vst.msk [vmem:[%s4 + $0x28] sm:$0xff] %vm237, %v226
  %244 = vst.msk [vmem:[%s4 + $0x30] sm:$0xff] %vm237, %v227
  %245 = vst.msk [vmem:[%s4 + $0x38] sm:$0xff] %vm237, %v228
  %246 = vst.msk [vmem:[%s4 + $0x40] sm:$0xff] %vm237, %v229
  %247 = vst.msk [vmem:[%s4 + $0x48] sm:$0xff] %vm237, %v230
  %248 = vst.msk [vmem:[%s4 + $0x50] sm:$0xff] %vm237, %v231
  %249 = vst.msk [vmem:[%s4 + $0x58] sm:$0xff] %vm237, %v232
  %250 = vst.msk [vmem:[%s4 + $0x60] sm:$0xff] %vm237, %v233
  %251 = vst.msk [vmem:[%s4 + $0x68] sm:$0xff] %vm237, %v234
  %252 = vst.msk [vmem:[%s4 + $0x70] sm:$0xff] %vm237, %v235
  %253 = vst.msk [vmem:[%s4 + $0x78] sm:$0xff] %vm237, %v236
  // Predicated region
  $region18: #{_lambda_.10} parent=0 // pred_check
    _
  $region19: #{_lambda_.10} parent=0 // pred_check_branch
    %255 = sbr.rel (0) target = $region21
  $region20: #{_lambda_.10} parent=0 // pred_region
    _
  $region21: #{_lambda_.10} parent=0 // pred_fallthru
    _
  // Predicated region
  $region22: #{_lambda_.10} parent=0 // pred_check
    _
  $region23: #{_lambda_.10} parent=0 // pred_check_branch
    %257 = sbr.rel (0) target = $region25
  $region24: #{_lambda_.10} parent=0 // pred_region
    _
  $region25: #{_lambda_.10} parent=0 // pred_fallthru
    _

// kernel: _lambda_.11
$region0: #{_lambda_.11}
  #allocation0 [shape = 'u32[]', space=smem, size = 0x4, offset = 0x4, fixed_abs, tag = 'smem constant byte address 0x4 - core index']
  #allocation1 [shape = 'u32[72,128]{1,0:T(1,128)}', space=vmem, size = 0x9000, scoped, tag = 'internal scratch']
  %s0 = inlined_call_operand.vmem [shape: f32[128,72], index: 0, kind: input, shape index: {}]
  %s1 = inlined_call_operand.vmem [shape: f32[72,16], index: 1, kind: input, shape index: {}]
  %s2 = inlined_call_operand.vmem [shape: f32[1,16], index: 2, kind: input, shape index: {}]
  %s3 = inlined_call_operand.vmem [shape: f32[1,16], index: 3, kind: input, shape index: {}]
  %s4 = inlined_call_operand.vmem [shape: f32[128,16], index: 4, kind: output, shape index: {}]
  %s5 = sld [smem:[#allocation0]]
  $region26: #{_lambda_.11} parent=0
    _
  %s7 = ssub.s32 1, %s5
  %s8 = scalar_select 0, %s7, %s5
  // Predicated region
  $region2: #{_lambda_.11} parent=0 // pred_check
    _
  $region3: #{_lambda_.11} parent=0 // pred_check_branch
    %10 = sbr.rel (0) target = $region5
  $region4: #{_lambda_.11} parent=0 // pred_region
    _
  $region5: #{_lambda_.11} parent=0 // pred_fallthru
    _
  // Predicated region
  $region6: #{_lambda_.11} parent=0 // pred_check
    _
  $region7: #{_lambda_.11} parent=0 // pred_check_branch
    %12 = sbr.rel (0) target = $region9
  $region8: #{_lambda_.11} parent=0 // pred_region
    _
  $region9: #{_lambda_.11} parent=0 // pred_fallthru
    _
  // Predicated region
  $region10: #{_lambda_.11} parent=0 // pred_check
    _
  $region11: #{_lambda_.11} parent=0 // pred_check_branch
    %14 = sbr.rel (0) target = $region13
  $region12: #{_lambda_.11} parent=0 // pred_region
    _
  $region13: #{_lambda_.11} parent=0 // pred_fallthru
    _
  // Predicated region
  $region14: #{_lambda_.11} parent=0 // pred_check
    _
  $region15: #{_lambda_.11} parent=0 // pred_check_branch
    %16 = sbr.rel (0) target = $region17
  $region16: #{_lambda_.11} parent=0 // pred_region
    _
  $region17: #{_lambda_.11} parent=0 // pred_fallthru
    _
  %v17 = vld [vmem:[%s0] sm:$0xff]
  %v18 = vld [vmem:[%s0 + $0x8] sm:$0xff]
  %v19 = vld [vmem:[%s0 + $0x10] sm:$0xff]
  %v20 = vld [vmem:[%s0 + $0x18] sm:$0xff]
  %v21 = vld [vmem:[%s0 + $0x20] sm:$0xff]
  %v22 = vld [vmem:[%s0 + $0x28] sm:$0xff]
  %v23 = vld [vmem:[%s0 + $0x30] sm:$0xff]
  %v24 = vld [vmem:[%s0 + $0x38] sm:$0xff]
  %v25 = vld [vmem:[%s0 + $0x40] sm:$0xff]
  %v26 = vld [vmem:[%s0 + $0x48] sm:$0xff]
  %v27 = vld [vmem:[%s0 + $0x50] sm:$0xff]
  %v28 = vld [vmem:[%s0 + $0x58] sm:$0xff]
  %v29 = vld [vmem:[%s0 + $0x60] sm:$0xff]
  %v30 = vld [vmem:[%s0 + $0x68] sm:$0xff]
  %v31 = vld [vmem:[%s0 + $0x70] sm:$0xff]
  %v32 = vld [vmem:[%s0 + $0x78] sm:$0xff]
  %v33 = vld [vmem:[%s1] sm:$0xff]
  %v34 = vld [vmem:[%s1 + $0x8] sm:$0xff]
  %v35 = vld [vmem:[%s1 + $0x10] sm:$0xff]
  %v36 = vld [vmem:[%s1 + $0x18] sm:$0xff]
  %v37 = vld [vmem:[%s1 + $0x20] sm:$0xff]
  %v38 = vld [vmem:[%s1 + $0x28] sm:$0xff]
  %v39 = vld [vmem:[%s1 + $0x30] sm:$0xff]
  %v40 = vld [vmem:[%s1 + $0x38] sm:$0xff]
  %v41 = vld [vmem:[%s1 + $0x40] sm:$0xff]
  %vm42 = vcmask 588800
  %v44 = vsel %vm42, %v17, 0
  %v47 = vsel %vm42, %v18, 0
  %v50 = vsel %vm42, %v19, 0
  %v53 = vsel %vm42, %v20, 0
  %v56 = vsel %vm42, %v21, 0
  %v59 = vsel %vm42, %v22, 0
  %v62 = vsel %vm42, %v23, 0
  %v65 = vsel %vm42, %v24, 0
  %v68 = vsel %vm42, %v25, 0
  %v71 = vsel %vm42, %v26, 0
  %v74 = vsel %vm42, %v27, 0
  %v77 = vsel %vm42, %v28, 0
  %v80 = vsel %vm42, %v29, 0
  %v83 = vsel %vm42, %v30, 0
  %v86 = vsel %vm42, %v31, 0
  %v89 = vsel %vm42, %v32, 0
  %91 = vmatpush.msra.mxu0 0.0
  %92 = vmatpush.msra.mxu0 0.0
  %93 = vmatpush.msra.mxu0 0.0
  %94 = vmatpush.msra.mxu0 0.0
  %95 = vmatpush.msra.mxu0 0.0
  %96 = vmatpush.msra.mxu0 0.0
  %97 = vmatpush.msra.mxu0 0.0
  %98 = vmatpush.msra.mxu0 %v41
  %99 = vmatpush.msra.mxu0 %v40
  %100 = vmatpush.msra.mxu0 %v39
  %101 = vmatpush.msra.mxu0 %v38
  %102 = vmatpush.msra.mxu0 %v37
  %103 = vmatpush.msra.mxu0 %v36
  %104 = vmatpush.msra.mxu0 %v35
  %105 = vmatpush.msra.mxu0 %v34
  %106 = vmatpush.msra.mxu0 %v33
  %107 = vmatmul.f32.gmra.mxu0 %v44
  %v108 = vpop.f32.mrf.mxu0
  %v109 = vadd.f32 0.0, %v108
  %110 = vmatmul.f32.gmra.mxu0 %v47
  %v111 = vpop.f32.mrf.mxu0
  %v112 = vadd.f32 0.0, %v111
  %113 = vmatmul.f32.gmra.mxu0 %v50
  %v114 = vpop.f32.mrf.mxu0
  %v115 = vadd.f32 0.0, %v114
  %116 = vmatmul.f32.gmra.mxu0 %v53
  %v117 = vpop.f32.mrf.mxu0
  %v118 = vadd.f32 0.0, %v117
  %119 = vmatmul.f32.gmra.mxu0 %v56
  %v120 = vpop.f32.mrf.mxu0
  %v121 = vadd.f32 0.0, %v120
  %122 = vmatmul.f32.gmra.mxu0 %v59
  %v123 = vpop.f32.mrf.mxu0
  %v124 = vadd.f32 0.0, %v123
  %125 = vmatmul.f32.gmra.mxu0 %v62
  %v126 = vpop.f32.mrf.mxu0
  %v127 = vadd.f32 0.0, %v126
  %128 = vmatmul.f32.gmra.mxu0 %v65
  %v129 = vpop.f32.mrf.mxu0
  %v130 = vadd.f32 0.0, %v129
  %131 = vmatmul.f32.gmra.mxu0 %v68
  %v132 = vpop.f32.mrf.mxu0
  %v133 = vadd.f32 0.0, %v132
  %134 = vmatmul.f32.gmra.mxu0 %v71
  %v135 = vpop.f32.mrf.mxu0
  %v136 = vadd.f32 0.0, %v135
  %137 = vmatmul.f32.gmra.mxu0 %v74
  %v138 = vpop.f32.mrf.mxu0
  %v139 = vadd.f32 0.0, %v138
  %140 = vmatmul.f32.gmra.mxu0 %v77
  %v141 = vpop.f32.mrf.mxu0
  %v142 = vadd.f32 0.0, %v141
  %143 = vmatmul.f32.gmra.mxu0 %v80
  %v144 = vpop.f32.mrf.mxu0
  %v145 = vadd.f32 0.0, %v144
  %146 = vmatmul.f32.gmra.mxu0 %v83
  %v147 = vpop.f32.mrf.mxu0
  %v148 = vadd.f32 0.0, %v147
  %149 = vmatmul.f32.gmra.mxu0 %v86
  %v150 = vpop.f32.mrf.mxu0
  %v151 = vadd.f32 0.0, %v150
  %152 = vmatmul.f32.gmra.mxu0 %v89
  %v153 = vpop.f32.mrf.mxu0
  %v154 = vadd.f32 0.0, %v153
  %155 = vdwg.mxu0
  %v156 = vld [vmem:[%s2] sm:$0x1]
  %v158 = vperm.slane %v156, 0
  %v160 = vmul.f32 %v109, %v158
  %v161 = vmul.f32 %v112, %v158
  %v162 = vmul.f32 %v115, %v158
  %v163 = vmul.f32 %v118, %v158
  %v164 = vmul.f32 %v121, %v158
  %v165 = vmul.f32 %v124, %v158
  %v166 = vmul.f32 %v127, %v158
  %v167 = vmul.f32 %v130, %v158
  %v168 = vmul.f32 %v133, %v158
  %v169 = vmul.f32 %v136, %v158
  %v170 = vmul.f32 %v139, %v158
  %v171 = vmul.f32 %v142, %v158
  %v172 = vmul.f32 %v145, %v158
  %v173 = vmul.f32 %v148, %v158
  %v174 = vmul.f32 %v151, %v158
  %v175 = vmul.f32 %v154, %v158
  %v176 = vld [vmem:[%s3] sm:$0x1]
  %v178 = vperm.slane %v176, 0
  %v180 = vadd.f32 %v160, %v178
  %v181 = vadd.f32 %v161, %v178
  %v182 = vadd.f32 %v162, %v178
  %v183 = vadd.f32 %v163, %v178
  %v184 = vadd.f32 %v164, %v178
  %v185 = vadd.f32 %v165, %v178
  %v186 = vadd.f32 %v166, %v178
  %v187 = vadd.f32 %v167, %v178
  %v188 = vadd.f32 %v168, %v178
  %v189 = vadd.f32 %v169, %v178
  %v190 = vadd.f32 %v170, %v178
  %v191 = vadd.f32 %v171, %v178
  %v192 = vadd.f32 %v172, %v178
  %v193 = vadd.f32 %v173, %v178
  %v194 = vadd.f32 %v174, %v178
  %v195 = vadd.f32 %v175, %v178
  %vm196 = vcmp.ge.f32.partialorder %v180, 0.0
  %vm197 = vcmp.ge.f32.partialorder %v181, 0.0
  %vm198 = vcmp.ge.f32.partialorder %v182, 0.0
  %vm199 = vcmp.ge.f32.partialorder %v183, 0.0
  %vm200 = vcmp.ge.f32.partialorder %v184, 0.0
  %vm201 = vcmp.ge.f32.partialorder %v185, 0.0
  %vm202 = vcmp.ge.f32.partialorder %v186, 0.0
  %vm203 = vcmp.ge.f32.partialorder %v187, 0.0
  %vm204 = vcmp.ge.f32.partialorder %v188, 0.0
  %vm205 = vcmp.ge.f32.partialorder %v189, 0.0
  %vm206 = vcmp.ge.f32.partialorder %v190, 0.0
  %vm207 = vcmp.ge.f32.partialorder %v191, 0.0
  %vm208 = vcmp.ge.f32.partialorder %v192, 0.0
  %vm209 = vcmp.ge.f32.partialorder %v193, 0.0
  %vm210 = vcmp.ge.f32.partialorder %v194, 0.0
  %vm211 = vcmp.ge.f32.partialorder %v195, 0.0
  %v212 = vmul.f32 %v180, 0.01
  %v213 = vmul.f32 %v181, 0.01
  %v214 = vmul.f32 %v182, 0.01
  %v215 = vmul.f32 %v183, 0.01
  %v216 = vmul.f32 %v184, 0.01
  %v217 = vmul.f32 %v185, 0.01
  %v218 = vmul.f32 %v186, 0.01
  %v219 = vmul.f32 %v187, 0.01
  %v220 = vmul.f32 %v188, 0.01
  %v221 = vmul.f32 %v189, 0.01
  %v222 = vmul.f32 %v190, 0.01
  %v223 = vmul.f32 %v191, 0.01
  %v224 = vmul.f32 %v192, 0.01
  %v225 = vmul.f32 %v193, 0.01
  %v226 = vmul.f32 %v194, 0.01
  %v227 = vmul.f32 %v195, 0.01
  %v228 = vsel %vm196, %v180, %v212
  %v229 = vsel %vm197, %v181, %v213
  %v230 = vsel %vm198, %v182, %v214
  %v231 = vsel %vm199, %v183, %v215
  %v232 = vsel %vm200, %v184, %v216
  %v233 = vsel %vm201, %v185, %v217
  %v234 = vsel %vm202, %v186, %v218
  %v235 = vsel %vm203, %v187, %v219
  %v236 = vsel %vm204, %v188, %v220
  %v237 = vsel %vm205, %v189, %v221
  %v238 = vsel %vm206, %v190, %v222
  %v239 = vsel %vm207, %v191, %v223
  %v240 = vsel %vm208, %v192, %v224
  %v241 = vsel %vm209, %v193, %v225
  %v242 = vsel %vm210, %v194, %v226
  %v243 = vsel %vm211, %v195, %v227
  %vm244 = vcmask 130048
  %245 = vst.msk [vmem:[%s4] sm:$0xff] %vm244, %v228
  %246 = vst.msk [vmem:[%s4 + $0x8] sm:$0xff] %vm244, %v229
  %247 = vst.msk [vmem:[%s4 + $0x10] sm:$0xff] %vm244, %v230
  %248 = vst.msk [vmem:[%s4 + $0x18] sm:$0xff] %vm244, %v231
  %249 = vst.msk [vmem:[%s4 + $0x20] sm:$0xff] %vm244, %v232
  %250 = vst.msk [vmem:[%s4 + $0x28] sm:$0xff] %vm244, %v233
  %251 = vst.msk [vmem:[%s4 + $0x30] sm:$0xff] %vm244, %v234
  %252 = vst.msk [vmem:[%s4 + $0x38] sm:$0xff] %vm244, %v235
  %253 = vst.msk [vmem:[%s4 + $0x40] sm:$0xff] %vm244, %v236
  %254 = vst.msk [vmem:[%s4 + $0x48] sm:$0xff] %vm244, %v237
  %255 = vst.msk [vmem:[%s4 + $0x50] sm:$0xff] %vm244, %v238
  %256 = vst.msk [vmem:[%s4 + $0x58] sm:$0xff] %vm244, %v239
  %257 = vst.msk [vmem:[%s4 + $0x60] sm:$0xff] %vm244, %v240
  %258 = vst.msk [vmem:[%s4 + $0x68] sm:$0xff] %vm244, %v241
  %259 = vst.msk [vmem:[%s4 + $0x70] sm:$0xff] %vm244, %v242
  %260 = vst.msk [vmem:[%s4 + $0x78] sm:$0xff] %vm244, %v243
  // Predicated region
  $region18: #{_lambda_.11} parent=0 // pred_check
    _
  $region19: #{_lambda_.11} parent=0 // pred_check_branch
    %262 = sbr.rel (0) target = $region21
  $region20: #{_lambda_.11} parent=0 // pred_region
    _
  $region21: #{_lambda_.11} parent=0 // pred_fallthru
    _
  // Predicated region
  $region22: #{_lambda_.11} parent=0 // pred_check
    _
  $region23: #{_lambda_.11} parent=0 // pred_check_branch
    %264 = sbr.rel (0) target = $region25
  $region24: #{_lambda_.11} parent=0 // pred_region
    _
  $region25: #{_lambda_.11} parent=0 // pred_fallthru
    _

// kernel: _lambda_.15
$region0: #{_lambda_.15}
  #allocation0 [shape = 'u32[]', space=smem, size = 0x4, offset = 0x4, fixed_abs, tag = 'smem constant byte address 0x4 - core index']
  #allocation1 [shape = 'u32[72,128]{1,0:T(1,128)}', space=vmem, size = 0x9000, scoped, tag = 'internal scratch']
  %s0 = inlined_call_operand.vmem [shape: f32[4,8,32], index: 0, kind: input, shape index: {}]
  %s1 = inlined_call_operand.hbm [shape: f32[8,32], index: 1, kind: output, shape index: {}]
  %s2 = sld [smem:[#allocation0]]
  $region14: #{_lambda_.15} parent=0
    _
  %s4 = ssub.s32 1, %s2
  %s5 = scalar_select 0, %s4, %s2
  $region1: #{_lambda_.15} parent=0
    #allocation2 [shape = 'u8[4096]{0}', space=vmem, size = 0x1000, scoped, tag = 'output window, operand 0, single buffered']
    #allocation3 [shape = 's32[1]{0}', space=sflag, size = 0x4, scoped, tag = 'scoped memory for _lambda_.15']
    %6 = vsyncpa [#allocation3], 0
    // Predicated region
    $region2: #{_lambda_.15} parent=1 // pred_check
      _
    $region3: #{_lambda_.15} parent=1 // pred_check_branch
      %8 = sbr.rel (0) target = $region5
    $region4: #{_lambda_.15} parent=1 // pred_region
      _
    $region5: #{_lambda_.15} parent=1 // pred_fallthru
      _
    %v9 = vld [vmem:[%s0] sm:$0xff]
    %s10 = scalar_lea.vmem %s0, 8
    %v11 = vld [vmem:[%s10] sm:$0xff]
    %v12 = vmax.f32 %v9, %v11
    %s13 = scalar_lea.vmem %s0, 16
    %v14 = vld [vmem:[%s13] sm:$0xff]
    %v15 = vmax.f32 %v12, %v14
    %s16 = scalar_lea.vmem %s0, 24
    %v17 = vld [vmem:[%s16] sm:$0xff]
    %v18 = vmax.f32 %v15, %v17
    %vm19 = vcmask 261120
    %20 = vst.msk [vmem:[#allocation2] sm:$0xff] %vm19, %v18
    // Predicated region
    $region6: #{_lambda_.15} parent=1 // pred_check
      _
    $region7: #{_lambda_.15} parent=1 // pred_check_branch
      %22 = sbr.rel (0) target = $region9
    $region8: #{_lambda_.15} parent=1 // pred_region
      %24 = vsyncadd [#allocation3], 0
      %s26 = sshll.u32 [#allocation2], 4
      %s27 = int_to_ptr.vmem [resolvable:$true] %s26
      %s28 = sshll.u32 %s1, 4
      %s29 = int_to_ptr.hbm [resolvable:$true] %s28
      %31 = dma.vmem_to_hbm [thread:$0]  %s27, 128, %s29, [#allocation3]
    $region9: #{_lambda_.15} parent=1 // pred_fallthru
      _
    // Predicated region
    $region10: #{_lambda_.15} parent=1 // pred_check
      _
    $region11: #{_lambda_.15} parent=1 // pred_check_branch
      %33 = sbr.rel (0) target = $region13
    $region12: #{_lambda_.15} parent=1 // pred_region
      %35 = dma.done [#allocation3], 128
    $region13: #{_lambda_.15} parent=1 // pred_fallthru
      _
    %36 = vsyncpa [#allocation3], 1

// kernel: _lambda_.14
$region0: #{_lambda_.14}
  #allocation0 [shape = 'u32[]', space=smem, size = 0x4, offset = 0x4, fixed_abs, tag = 'smem constant byte address 0x4 - core index']
  #allocation1 [shape = 'u32[72,128]{1,0:T(1,128)}', space=vmem, size = 0x9000, scoped, tag = 'internal scratch']
  %s0 = inlined_call_operand.vmem [shape: f32[32,144], index: 0, kind: input, shape index: {}]
  %s1 = inlined_call_operand.vmem [shape: f32[144,32], index: 1, kind: input, shape index: {}]
  %s2 = inlined_call_operand.vmem [shape: f32[1,32], index: 2, kind: input, shape index: {}]
  %s3 = inlined_call_operand.vmem [shape: f32[1,32], index: 3, kind: input, shape index: {}]
  %s4 = inlined_call_operand.vmem [shape: f32[32,32], index: 4, kind: output, shape index: {}]
  %s5 = sld [smem:[#allocation0]]
  $region26: #{_lambda_.14} parent=0
    _
  %s7 = ssub.s32 1, %s5
  %s8 = scalar_select 0, %s7, %s5
  // Predicated region
  $region2: #{_lambda_.14} parent=0 // pred_check
    _
  $region3: #{_lambda_.14} parent=0 // pred_check_branch
    %10 = sbr.rel (0) target = $region5
  $region4: #{_lambda_.14} parent=0 // pred_region
    _
  $region5: #{_lambda_.14} parent=0 // pred_fallthru
    _
  // Predicated region
  $region6: #{_lambda_.14} parent=0 // pred_check
    _
  $region7: #{_lambda_.14} parent=0 // pred_check_branch
    %12 = sbr.rel (0) target = $region9
  $region8: #{_lambda_.14} parent=0 // pred_region
    _
  $region9: #{_lambda_.14} parent=0 // pred_fallthru
    _
  // Predicated region
  $region10: #{_lambda_.14} parent=0 // pred_check
    _
  $region11: #{_lambda_.14} parent=0 // pred_check_branch
    %14 = sbr.rel (0) target = $region13
  $region12: #{_lambda_.14} parent=0 // pred_region
    _
  $region13: #{_lambda_.14} parent=0 // pred_fallthru
    _
  // Predicated region
  $region14: #{_lambda_.14} parent=0 // pred_check
    _
  $region15: #{_lambda_.14} parent=0 // pred_check_branch
    %16 = sbr.rel (0) target = $region17
  $region16: #{_lambda_.14} parent=0 // pred_region
    _
  $region17: #{_lambda_.14} parent=0 // pred_fallthru
    _
  %v17 = vld [vmem:[%s0] sm:$0xff]
  %v18 = vld [vmem:[%s0 + $0x8] sm:$0xff]
  %v19 = vld [vmem:[%s0 + $0x10] sm:$0xff]
  %v20 = vld [vmem:[%s0 + $0x18] sm:$0xff]
  %v21 = vld [vmem:[%s0 + $0x20] sm:$0xff]
  %v22 = vld [vmem:[%s0 + $0x28] sm:$0xff]
  %v23 = vld [vmem:[%s0 + $0x30] sm:$0xff]
  %v24 = vld [vmem:[%s0 + $0x38] sm:$0xff]
  %v25 = vld [vmem:[%s1] sm:$0xff]
  %v26 = vld [vmem:[%s1 + $0x8] sm:$0xff]
  %v27 = vld [vmem:[%s1 + $0x10] sm:$0xff]
  %v28 = vld [vmem:[%s1 + $0x18] sm:$0xff]
  %v29 = vld [vmem:[%s1 + $0x20] sm:$0xff]
  %v30 = vld [vmem:[%s1 + $0x28] sm:$0xff]
  %v31 = vld [vmem:[%s1 + $0x30] sm:$0xff]
  %v32 = vld [vmem:[%s1 + $0x38] sm:$0xff]
  %v33 = vld [vmem:[%s1 + $0x40] sm:$0xff]
  %v34 = vld [vmem:[%s1 + $0x48] sm:$0xff]
  %v35 = vld [vmem:[%s1 + $0x50] sm:$0xff]
  %v36 = vld [vmem:[%s1 + $0x58] sm:$0xff]
  %v37 = vld [vmem:[%s1 + $0x60] sm:$0xff]
  %v38 = vld [vmem:[%s1 + $0x68] sm:$0xff]
  %v39 = vld [vmem:[%s1 + $0x70] sm:$0xff]
  %v40 = vld [vmem:[%s1 + $0x78] sm:$0xff]
  %v41 = vld [vmem:[%s1 + $0x80] sm:$0xff]
  %v42 = vld [vmem:[%s1 + $0x88] sm:$0xff]
  %vm43 = vcmask 130048
  %v45 = vsel %vm43, %v18, 0
  %v48 = vsel %vm43, %v20, 0
  %v51 = vsel %vm43, %v22, 0
  %v54 = vsel %vm43, %v24, 0
  %56 = vmatpush.msra.mxu0 %v40
  %57 = vmatpush.msra.mxu0 %v39
  %58 = vmatpush.msra.mxu0 %v38
  %59 = vmatpush.msra.mxu0 %v37
  %60 = vmatpush.msra.mxu0 %v36
  %61 = vmatpush.msra.mxu0 %v35
  %62 = vmatpush.msra.mxu0 %v34
  %63 = vmatpush.msra.mxu0 %v33
  %64 = vmatpush.msra.mxu0 %v32
  %65 = vmatpush.msra.mxu0 %v31
  %66 = vmatpush.msra.mxu0 %v30
  %67 = vmatpush.msra.mxu0 %v29
  %68 = vmatpush.msra.mxu0 %v28
  %69 = vmatpush.msra.mxu0 %v27
  %70 = vmatpush.msra.mxu0 %v26
  %71 = vmatpush.msra.mxu0 %v25
  %72 = vmatmul.f32.gmra.mxu0 %v17
  %v73 = vpop.f32.mrf.mxu0
  %v74 = vadd.f32 0.0, %v73
  %75 = vmatmul.f32.gmra.mxu0 %v19
  %v76 = vpop.f32.mrf.mxu0
  %v77 = vadd.f32 0.0, %v76
  %78 = vmatmul.f32.gmra.mxu0 %v21
  %v79 = vpop.f32.mrf.mxu0
  %v80 = vadd.f32 0.0, %v79
  %81 = vmatmul.f32.gmra.mxu0 %v23
  %v82 = vpop.f32.mrf.mxu0
  %v83 = vadd.f32 0.0, %v82
  %84 = vdwg.mxu0
  %85 = vmatpush.msra.mxu0 0.0
  %86 = vmatpush.msra.mxu0 0.0
  %87 = vmatpush.msra.mxu0 0.0
  %88 = vmatpush.msra.mxu0 0.0
  %89 = vmatpush.msra.mxu0 0.0
  %90 = vmatpush.msra.mxu0 0.0
  %91 = vmatpush.msra.mxu0 0.0
  %92 = vmatpush.msra.mxu0 0.0
  %93 = vmatpush.msra.mxu0 0.0
  %94 = vmatpush.msra.mxu0 0.0
  %95 = vmatpush.msra.mxu0 0.0
  %96 = vmatpush.msra.mxu0 0.0
  %97 = vmatpush.msra.mxu0 0.0
  %98 = vmatpush.msra.mxu0 0.0
  %99 = vmatpush.msra.mxu0 %v42
  %100 = vmatpush.msra.mxu0 %v41
  %101 = vmatmul.f32.gmra.mxu0 %v45
  %v102 = vpop.f32.mrf.mxu0
  %v103 = vadd.f32 %v74, %v102
  %104 = vmatmul.f32.gmra.mxu0 %v48
  %v105 = vpop.f32.mrf.mxu0
  %v106 = vadd.f32 %v77, %v105
  %107 = vmatmul.f32.gmra.mxu0 %v51
  %v108 = vpop.f32.mrf.mxu0
  %v109 = vadd.f32 %v80, %v108
  %110 = vmatmul.f32.gmra.mxu0 %v54
  %v111 = vpop.f32.mrf.mxu0
  %v112 = vadd.f32 %v83, %v111
  %113 = vdwg.mxu0
  %v114 = vld [vmem:[%s2] sm:$0x1]
  %v116 = vperm.slane %v114, 0
  %v118 = vmul.f32 %v103, %v116
  %v119 = vmul.f32 %v106, %v116
  %v120 = vmul.f32 %v109, %v116
  %v121 = vmul.f32 %v112, %v116
  %v122 = vld [vmem:[%s3] sm:$0x1]
  %v124 = vperm.slane %v122, 0
  %v126 = vadd.f32 %v118, %v124
  %v127 = vadd.f32 %v119, %v124
  %v128 = vadd.f32 %v120, %v124
  %v129 = vadd.f32 %v121, %v124
  %vm130 = vcmp.ge.f32.partialorder %v126, 0.0
  %vm131 = vcmp.ge.f32.partialorder %v127, 0.0
  %vm132 = vcmp.ge.f32.partialorder %v128, 0.0
  %vm133 = vcmp.ge.f32.partialorder %v129, 0.0
  %v134 = vmul.f32 %v126, 0.01
  %v135 = vmul.f32 %v127, 0.01
  %v136 = vmul.f32 %v128, 0.01
  %v137 = vmul.f32 %v129, 0.01
  %v138 = vsel %vm130, %v126, %v134
  %v139 = vsel %vm131, %v127, %v135
  %v140 = vsel %vm132, %v128, %v136
  %v141 = vsel %vm133, %v129, %v137
  %vm142 = vcmask 261120
  %143 = vst.msk [vmem:[%s4] sm:$0xff] %vm142, %v138
  %144 = vst.msk [vmem:[%s4 + $0x8] sm:$0xff] %vm142, %v139
  %145 = vst.msk [vmem:[%s4 + $0x10] sm:$0xff] %vm142, %v140
  %146 = vst.msk [vmem:[%s4 + $0x18] sm:$0xff] %vm142, %v141
  // Predicated region
  $region18: #{_lambda_.14} parent=0 // pred_check
    _
  $region19: #{_lambda_.14} parent=0 // pred_check_branch
    %148 = sbr.rel (0) target = $region21
  $region20: #{_lambda_.14} parent=0 // pred_region
    _
  $region21: #{_lambda_.14} parent=0 // pred_fallthru
    _
  // Predicated region
  $region22: #{_lambda_.14} parent=0 // pred_check
    _
  $region23: #{_lambda_.14} parent=0 // pred_check_branch
    %150 = sbr.rel (0) target = $region25
  $region24: #{_lambda_.14} parent=0 // pred_region
    _
  $region25: #{_lambda_.14} parent=0 // pred_fallthru
    _

</llo_original>
